<compile_context>
chip_gen: v7x
topology: tpu7x:2x2x1
jax: 0.10.0
libtpu: 0.0.40
codegen_flags: <defaults>
</compile_context>

<pallas_src>
import functools

import jax
import jax.numpy as jnp
from jax.experimental import pallas as pl
from jax.experimental.pallas import tpu as pltpu


def _round_up(v, m):
    return (v + m - 1) // m * m


def _mha_mil_kernel(x_ref, vu_ref, wblk_ref, bag_ref, attn_ref,
                    logits_sc, m_sc, l_sc, acc_sc, *, n_heads, use_bf16):
    t = pl.program_id(1)
    nt = pl.num_programs(1)

    TN, D = x_ref.shape[1], x_ref.shape[2]
    Gp = wblk_ref.shape[0]                      # padded n_heads*hidden (mult of 128)

    @pl.when(t == 0)
    def _init():
        m_sc[...] = jnp.full_like(m_sc, -jnp.inf)
        l_sc[...] = jnp.zeros_like(l_sc)
        acc_sc[...] = jnp.zeros_like(acc_sc)

    x2d = x_ref[...].reshape(TN, D)             # lane-dense 2-D operand

    # One matmul covering the tanh gate and sigmoid gate of every head.
    if use_bf16:
        proj = jnp.dot(x2d.astype(jnp.bfloat16),
                       vu_ref[...].astype(jnp.bfloat16),
                       preferred_element_type=jnp.float32)       # (TN, 2*Gp)
    else:
        proj = jnp.dot(x2d, vu_ref[...],
                       preferred_element_type=jnp.float32)       # (TN, 2*Gp)

    # Lane-aligned split (Gp % 128 == 0); padded columns give tanh(0)*sig(0)=0.
    gated = jnp.tanh(proj[:, :Gp]) * jax.nn.sigmoid(proj[:, Gp:])

    # All heads' logits via the block-diagonal weight, then lane-dense in N.
    logits = jnp.dot(gated, wblk_ref[...],
                     preferred_element_type=jnp.float32)         # (TN, Hp)
    logits_t = logits.T                                          # (Hp, TN)
    logits_sc[t] = logits_t                                      # stash for final softmax

    # --- online (flash-style) head-0 softmax stats + bag accumulation ------
    logit0 = logits_t[0:1, :]                                    # (1, TN), lanes = N
    m_old = m_sc[...]                                            # (1, 1)
    m_new = jnp.maximum(m_old, jnp.max(logit0, axis=-1, keepdims=True))
    alpha = jnp.exp(m_old - m_new)
    p0 = jnp.exp(logit0 - m_new)                                 # (1, TN)
    l_sc[...] = alpha * l_sc[...] + jnp.sum(p0, axis=-1, keepdims=True)
    # MXU contraction over the tile's instances: (1,TN) @ (TN,D) -> (1,D).
    acc_sc[...] = alpha * acc_sc[...] + jnp.dot(
        p0, x2d, preferred_element_type=jnp.float32)
    m_sc[...] = m_new

    # --- finalize on the last N tile ---------------------------------------
    @pl.when(t == nt - 1)
    def _finalize():
        bag = acc_sc[...] / l_sc[...]                            # exact division
        bag_ref[...] = bag.reshape(bag_ref.shape).astype(bag_ref.dtype)

        lg = logits_sc[...][:, :n_heads, :]                      # (nt, nh, TN), N on lanes
        mh = jnp.max(lg, axis=-1, keepdims=True)                 # lane reduce
        mh = jnp.max(mh, axis=0, keepdims=True)                  # (1, nh, 1)
        eh = jnp.exp(lg - mh)
        sh = jnp.sum(eh, axis=-1, keepdims=True)
        sh = jnp.sum(sh, axis=0, keepdims=True)                  # (1, nh, 1)
        attn = eh / sh                                           # (nt, nh, TN)
        attn_mean = jnp.mean(attn, axis=1)                       # (nt, TN)
        attn_ref[...] = attn_mean[None].astype(attn_ref.dtype)   # (1, nt, TN)


def multi_head_attention_mil(x, V_all, U_all, w_all, *, tn=None, use_bf16=False):
    """x: (B, N, D); V_all/U_all: (n_heads, D, H); w_all: (n_heads, H, 1)."""
    B, N, D = x.shape
    n_heads, _, H = V_all.shape
    G = n_heads * H
    Gp = _round_up(G, 128)                       # lane-aligned V/U split
    Hp = max(8, _round_up(n_heads, 8))           # padded logits width

    # Pick an N tile (multiple of 128 when possible; per-generation VMEM note:
    # at production D~1024, G~1024 keep TN <= ~2048 on v7x's 64 MiB VMEM,
    # larger tiles are fine on v5e/v6e's 128 MiB).
    if tn is None:
        tn = N
        for cand in (1024, 512, 256, 128):
            if N % cand == 0:
                tn = cand
                break
    assert N % tn == 0, "instance count must be divisible by the N tile"
    # TODO(synk): ragged N (N % tn != 0) needs a masked tail tile in the softmax.
    nt = N // tn

    dt = x.dtype
    # Fold all heads / both gates into one lane-dense projection weight, padded
    # with zeros so the V|U split sits on a 128-lane boundary.
    Vc = jnp.transpose(V_all, (1, 0, 2)).reshape(D, G)
    Uc = jnp.transpose(U_all, (1, 0, 2)).reshape(D, G)
    vu = jnp.zeros((D, 2 * Gp), dt).at[:, :G].set(Vc).at[:, Gp:Gp + G].set(Uc)

    # Block-diagonal logits weight: column h carries w_all[h] in rows h*H:(h+1)*H.
    eye = jnp.eye(n_heads, dtype=w_all.dtype)
    wcore = (w_all[:, :, 0][:, :, None] * eye[:, None, :]).reshape(G, n_heads)
    wblk = jnp.zeros((Gp, Hp), dt).at[:G, :n_heads].set(wcore)

    flops = B * nt * (2 * tn * D * (2 * Gp)      # fused projection matmul
                      + 2 * tn * Gp * Hp         # block-diagonal logits matmul
                      + 2 * tn * D)              # per-tile bag contraction
    transcendentals = B * (nt * (2 * tn * Gp + tn) + n_heads * N)
    bytes_accessed = 4 * (x.size + vu.size + wblk.size + B * D + B * N)

    kernel = functools.partial(_mha_mil_kernel, n_heads=n_heads, use_bf16=use_bf16)

    grid_spec = pltpu.PrefetchScalarGridSpec(
        num_scalar_prefetch=0,
        grid=(B, nt),
        in_specs=[
            # x streamed along N (default double-buffered pipelining).
            pl.BlockSpec((1, tn, D), lambda b, t: (b, t, 0)),
            # Fused weights stay resident across the whole N axis.
            pl.BlockSpec((D, 2 * Gp), lambda b, t: (0, 0)),
            pl.BlockSpec((Gp, Hp), lambda b, t: (0, 0)),
        ],
        out_specs=[
            pl.BlockSpec((1, 1, D), lambda b, t: (b, 0, 0)),     # bag (written last step)
            pl.BlockSpec((1, nt, tn), lambda b, t: (b, 0, 0)),   # attn (written last step)
        ],
        scratch_shapes=[
            pltpu.VMEM((nt, Hp, tn), jnp.float32),   # per-head logits, N lane-dense
            pltpu.VMEM((1, 1), jnp.float32),         # head-0 running max
            pltpu.VMEM((1, 1), jnp.float32),         # head-0 running denom
            pltpu.VMEM((1, D), jnp.float32),         # head-0 bag accumulator
        ],
    )

    bag, attn = pl.pallas_call(
        kernel,
        out_shape=(
            jax.ShapeDtypeStruct((B, 1, D), jnp.float32),
            jax.ShapeDtypeStruct((B, nt, tn), jnp.float32),
        ),
        grid_spec=grid_spec,
        compiler_params=pltpu.CompilerParams(
            dimension_semantics=("parallel", "arbitrary"),   # batch across v7x TCs
            vmem_limit_bytes=48 * 1024 * 1024,               # > v5e/v6e defaults, < v7x 64 MiB
        ),
        cost_estimate=pl.CostEstimate(
            flops=flops,
            transcendentals=transcendentals,
            bytes_accessed=bytes_accessed),
    )(x, vu, wblk)

    # (B, nt, tn) rows are exactly instances [t*tn, (t+1)*tn) -> contiguous reshape.
    return bag.reshape(B, D), attn.reshape(B, N)


def _reference(x, V_all, U_all, w_all):
    """Pure-JAX reproduction of the PyTorch forward, for verification."""
    n_heads = V_all.shape[0]
    attns, bags = [], []
    for h in range(n_heads):
        Vh = jnp.tanh(x @ V_all[h])
        Uh = jax.nn.sigmoid(x @ U_all[h])
        logits = ((Vh * Uh) @ w_all[h])[..., 0]
        attn = jax.nn.softmax(logits, axis=1)
        bag = jnp.sum(attn[..., None] * x, axis=1)
        attns.append(attn)
        bags.append(bag)
    attn_mean = jnp.mean(jnp.stack(attns, axis=0), axis=0)
    return bags[0], attn_mean


if __name__ == "__main__":
    # G = n_heads*H = 96 -> padded to 128 (exercises the zero-padding path);
    # N = 256 with TN = 128 -> 2 N-tiles (exercises the online softmax path).
    B, N, D, H, n_heads = 2, 256, 128, 24, 4

    key = jax.random.PRNGKey(0)
    kx, kv, ku, kw = jax.random.split(key, 4)
    x = jax.random.normal(kx, (B, N, D), dtype=jnp.float32)
    V_all = jax.random.normal(kv, (n_heads, D, H), dtype=jnp.float32) * 0.1
    U_all = jax.random.normal(ku, (n_heads, D, H), dtype=jnp.float32) * 0.1
    w_all = jax.random.normal(kw, (n_heads, H, 1), dtype=jnp.float32) * 0.1

    bag, attn = multi_head_attention_mil(x, V_all, U_all, w_all, use_bf16=False)
    jax.block_until_ready((bag, attn))

    bag_ref, attn_ref = _reference(x, V_all, U_all, w_all)
    assert jnp.allclose(bag, bag_ref, atol=1e-4, rtol=1e-4), \
        float(jnp.max(jnp.abs(bag - bag_ref)))
    assert jnp.allclose(attn, attn_ref, atol=1e-4, rtol=1e-4), \
        float(jnp.max(jnp.abs(attn - attn_ref)))

    print("KERNEL_OK")
</pallas_src>

<mosaic_0001>
module attributes {stable_mosaic.version = 11 : i64} {
  func.func @_mha_mil_kernel(%arg0: i32, %arg1: i32, %arg2: memref<1x256x128xf32, #tpu.memory_space<vmem>>, %arg3: memref<128x256xf32, #tpu.memory_space<vmem>>, %arg4: memref<128x8xf32, #tpu.memory_space<vmem>>, %arg5: memref<1x1x128xf32, #tpu.memory_space<vmem>>, %arg6: memref<1x1x256xf32, #tpu.memory_space<vmem>>, %arg7: memref<1x8x256xf32, #tpu.memory_space<vmem>>, %arg8: memref<1x1xf32, #tpu.memory_space<vmem>>, %arg9: memref<1x1xf32, #tpu.memory_space<vmem>>, %arg10: memref<1x128xf32, #tpu.memory_space<vmem>>) attributes {dimension_semantics = [#tpu.dimension_semantics<parallel>, #tpu.dimension_semantics<arbitrary>], iteration_bounds = array<i64: 2, 1>, scalar_prefetch = 0 : i64, scratch_operands = 4 : i64, tpu.core_type = #tpu.core_type<tc>, window_params = [{transform_indices = @transform_0, window_bounds = array<i64: 1, 256, 128>}, {pipeline_mode = #tpu.pipeline_mode<synchronous>, transform_indices = @transform_1, window_bounds = array<i64: 128, 256>}, {pipeline_mode = #tpu.pipeline_mode<synchronous>, transform_indices = @transform_2, window_bounds = array<i64: 128, 8>}, {transform_indices = @transform_3, window_bounds = array<i64: 1, 1, 128>}, {transform_indices = @transform_4, window_bounds = array<i64: 1, 1, 256>}]} {
    %c0_i32 = arith.constant 0 : i32
    %0 = arith.cmpi eq, %arg1, %c0_i32 : i32
    %1 = arith.extui %0 : i1 to i32
    %c0_i32_0 = arith.constant 0 : i32
    %2 = arith.cmpi ne, %1, %c0_i32_0 : i32
    scf.if %2 {
      %cst_28 = arith.constant 0xFF800000 : f32
      %49 = vector.broadcast %cst_28 : f32 to vector<1x1xf32>
      %c0_29 = arith.constant 0 : index
      %c0_30 = arith.constant 0 : index
      %50 = vector.load %arg8[%c0_29, %c0_30] : memref<1x1xf32, #tpu.memory_space<vmem>>, vector<1x1xf32>
      tpu.vector_store %arg8[%c0_29, %c0_30], %49 {strides = array<i32>} : memref<1x1xf32, #tpu.memory_space<vmem>>, vector<1x1xf32>,
      %cst_31 = arith.constant 0.000000e+00 : f32
      %51 = vector.broadcast %cst_31 : f32 to vector<1x1xf32>
      %c0_32 = arith.constant 0 : index
      %c0_33 = arith.constant 0 : index
      %52 = vector.load %arg9[%c0_32, %c0_33] : memref<1x1xf32, #tpu.memory_space<vmem>>, vector<1x1xf32>
      tpu.vector_store %arg9[%c0_32, %c0_33], %51 {strides = array<i32>} : memref<1x1xf32, #tpu.memory_space<vmem>>, vector<1x1xf32>,
      %cst_34 = arith.constant 0.000000e+00 : f32
      %53 = vector.broadcast %cst_34 : f32 to vector<1x128xf32>
      %c0_35 = arith.constant 0 : index
      %c0_36 = arith.constant 0 : index
      %54 = vector.load %arg10[%c0_35, %c0_36] : memref<1x128xf32, #tpu.memory_space<vmem>>, vector<1x128xf32>
      tpu.vector_store %arg10[%c0_35, %c0_36], %53 {strides = array<i32>} : memref<1x128xf32, #tpu.memory_space<vmem>>, vector<1x128xf32>,
    } else {
    }
    %c0 = arith.constant 0 : index
    %c0_1 = arith.constant 0 : index
    %c0_2 = arith.constant 0 : index
    %3 = vector.load %arg2[%c0, %c0_1, %c0_2] : memref<1x256x128xf32, #tpu.memory_space<vmem>>, vector<1x256x128xf32>
    %4 = vector.shape_cast %3 : vector<1x256x128xf32> to vector<256x128xf32>
    %c0_3 = arith.constant 0 : index
    %c0_4 = arith.constant 0 : index
    %5 = vector.load %arg3[%c0_3, %c0_4] : memref<128x256xf32, #tpu.memory_space<vmem>>, vector<128x256xf32>
    %cst = arith.constant dense<0.000000e+00> : vector<256x256xf32>
    %6 = tpu.matmul %4, %5, %cst {dimension_numbers = #tpu.dot_dimension_numbers<[1], [0], [0], [1], [0, 0, 1, 1], [], []>} : vector<256x128xf32>, vector<128x256xf32>, vector<256x256xf32> -> vector<256x256xf32>
    %7 = vector.extract_strided_slice %6 {offsets = [0, 0], sizes = [256, 128], strides = [1, 1]} : vector<256x256xf32> to vector<256x128xf32>
    %8 = math.tanh %7 : vector<256x128xf32>
    %9 = vector.extract_strided_slice %6 {offsets = [0, 128], sizes = [256, 128], strides = [1, 1]} : vector<256x256xf32> to vector<256x128xf32>
    %10 = arith.negf %9 : vector<256x128xf32>
    %11 = math.exp %10 : vector<256x128xf32>
    %cst_5 = arith.constant 1.000000e+00 : f32
    %12 = vector.broadcast %cst_5 : f32 to vector<256x128xf32>
    %13 = arith.addf %12, %11 : vector<256x128xf32>
    %14 = arith.divf %12, %13 : vector<256x128xf32>
    %15 = arith.mulf %8, %14 : vector<256x128xf32>
    %c0_6 = arith.constant 0 : index
    %c0_7 = arith.constant 0 : index
    %16 = vector.load %arg4[%c0_6, %c0_7] : memref<128x8xf32, #tpu.memory_space<vmem>>, vector<128x8xf32>
    %cst_8 = arith.constant dense<0.000000e+00> : vector<256x8xf32>
    %17 = tpu.matmul %15, %16, %cst_8 {dimension_numbers = #tpu.dot_dimension_numbers<[1], [0], [0], [1], [0, 0, 1, 1], [], []>} : vector<256x128xf32>, vector<128x8xf32>, vector<256x8xf32> -> vector<256x8xf32>
    %18 = tpu.transpose %17, [1, 0] : vector<256x8xf32> -> vector<8x256xf32>
    %19 = arith.index_cast %arg1 : i32 to index
    %c0_9 = arith.constant 0 : index
    %c0_10 = arith.constant 0 : index
    %20 = vector.load %arg7[%19, %c0_9, %c0_10] : memref<1x8x256xf32, #tpu.memory_space<vmem>>, vector<1x8x256xf32>
    %21 = vector.shape_cast %20 : vector<1x8x256xf32> to vector<8x256xf32>
    %22 = vector.shape_cast %18 : vector<8x256xf32> to vector<1x8x256xf32>
    tpu.vector_store %arg7[%19, %c0_9, %c0_10], %22 {strides = array<i32>} : memref<1x8x256xf32, #tpu.memory_space<vmem>>, vector<1x8x256xf32>,
    %23 = vector.extract_strided_slice %18 {offsets = [0, 0], sizes = [1, 256], strides = [1, 1]} : vector<8x256xf32> to vector<1x256xf32>
    %c0_11 = arith.constant 0 : index
    %c0_12 = arith.constant 0 : index
    %24 = vector.load %arg8[%c0_11, %c0_12] : memref<1x1xf32, #tpu.memory_space<vmem>>, vector<1x1xf32>
    %cst_13 = arith.constant dense<0xFF800000> : vector<1xf32>
    %25 = vector.multi_reduction <maximumf>, %23, %cst_13 [1] : vector<1x256xf32> to vector<1xf32>
    %26 = vector.shape_cast %25 : vector<1xf32> to vector<1x1xf32>
    %27 = arith.maximumf %24, %26 : vector<1x1xf32>
    %28 = arith.subf %24, %27 : vector<1x1xf32>
    %29 = math.exp %28 : vector<1x1xf32>
    %30 = vector.broadcast %27 : vector<1x1xf32> to vector<1x256xf32>
    %31 = arith.subf %23, %30 : vector<1x256xf32>
    %32 = math.exp %31 : vector<1x256xf32>
    %c0_14 = arith.constant 0 : index
    %c0_15 = arith.constant 0 : index
    %33 = vector.load %arg9[%c0_14, %c0_15] : memref<1x1xf32, #tpu.memory_space<vmem>>, vector<1x1xf32>
    %34 = arith.mulf %29, %33 : vector<1x1xf32>
    %cst_16 = arith.constant dense<0.000000e+00> : vector<1xf32>
    %35 = vector.multi_reduction <add>, %32, %cst_16 [1] : vector<1x256xf32> to vector<1xf32>
    %36 = vector.shape_cast %35 : vector<1xf32> to vector<1x1xf32>
    %37 = arith.addf %34, %36 : vector<1x1xf32>
    %c0_17 = arith.constant 0 : index
    %c0_18 = arith.constant 0 : index
    %38 = vector.load %arg9[%c0_17, %c0_18] : memref<1x1xf32, #tpu.memory_space<vmem>>, vector<1x1xf32>
    tpu.vector_store %arg9[%c0_17, %c0_18], %37 {strides = array<i32>} : memref<1x1xf32, #tpu.memory_space<vmem>>, vector<1x1xf32>,
    %c0_19 = arith.constant 0 : index
    %c0_20 = arith.constant 0 : index
    %39 = vector.load %arg10[%c0_19, %c0_20] : memref<1x128xf32, #tpu.memory_space<vmem>>, vector<1x128xf32>
    %40 = vector.broadcast %29 : vector<1x1xf32> to vector<1x128xf32>
    %41 = arith.mulf %40, %39 : vector<1x128xf32>
    %cst_21 = arith.constant dense<0.000000e+00> : vector<1x128xf32>
    %42 = tpu.matmul %32, %4, %cst_21 {dimension_numbers = #tpu.dot_dimension_numbers<[1], [0], [0], [1], [0, 0, 1, 1], [], []>} : vector<1x256xf32>, vector<256x128xf32>, vector<1x128xf32> -> vector<1x128xf32>
    %43 = arith.addf %41, %42 : vector<1x128xf32>
    %c0_22 = arith.constant 0 : index
    %c0_23 = arith.constant 0 : index
    %44 = vector.load %arg10[%c0_22, %c0_23] : memref<1x128xf32, #tpu.memory_space<vmem>>, vector<1x128xf32>
    tpu.vector_store %arg10[%c0_22, %c0_23], %43 {strides = array<i32>} : memref<1x128xf32, #tpu.memory_space<vmem>>, vector<1x128xf32>,
    %c0_24 = arith.constant 0 : index
    %c0_25 = arith.constant 0 : index
    %45 = vector.load %arg8[%c0_24, %c0_25] : memref<1x1xf32, #tpu.memory_space<vmem>>, vector<1x1xf32>
    tpu.vector_store %arg8[%c0_24, %c0_25], %27 {strides = array<i32>} : memref<1x1xf32, #tpu.memory_space<vmem>>, vector<1x1xf32>,
    %c0_i32_26 = arith.constant 0 : i32
    %46 = arith.cmpi eq, %arg1, %c0_i32_26 : i32
    %47 = arith.extui %46 : i1 to i32
    %c0_i32_27 = arith.constant 0 : i32
    %48 = arith.cmpi ne, %47, %c0_i32_27 : i32
    scf.if %48 {
      %c0_28 = arith.constant 0 : index
      %c0_29 = arith.constant 0 : index
      %49 = vector.load %arg10[%c0_28, %c0_29] : memref<1x128xf32, #tpu.memory_space<vmem>>, vector<1x128xf32>
      %c0_30 = arith.constant 0 : index
      %c0_31 = arith.constant 0 : index
      %50 = vector.load %arg9[%c0_30, %c0_31] : memref<1x1xf32, #tpu.memory_space<vmem>>, vector<1x1xf32>
      %51 = vector.broadcast %50 : vector<1x1xf32> to vector<1x128xf32>
      %52 = arith.divf %49, %51 : vector<1x128xf32>
      %53 = vector.shape_cast %52 : vector<1x128xf32> to vector<1x1x128xf32>
      %c0_32 = arith.constant 0 : index
      %c0_33 = arith.constant 0 : index
      %c0_34 = arith.constant 0 : index
      %54 = vector.load %arg5[%c0_32, %c0_33, %c0_34] : memref<1x1x128xf32, #tpu.memory_space<vmem>>, vector<1x1x128xf32>
      tpu.vector_store %arg5[%c0_32, %c0_33, %c0_34], %53 {strides = array<i32>} : memref<1x1x128xf32, #tpu.memory_space<vmem>>, vector<1x1x128xf32>,
      %c0_35 = arith.constant 0 : index
      %c0_36 = arith.constant 0 : index
      %c0_37 = arith.constant 0 : index
      %55 = vector.load %arg7[%c0_35, %c0_36, %c0_37] : memref<1x8x256xf32, #tpu.memory_space<vmem>>, vector<1x8x256xf32>
      %56 = vector.extract_strided_slice %55 {offsets = [0, 0, 0], sizes = [1, 4, 256], strides = [1, 1, 1]} : vector<1x8x256xf32> to vector<1x4x256xf32>
      %cst_38 = arith.constant dense<0xFF800000> : vector<1x4xf32>
      %57 = vector.multi_reduction <maximumf>, %56, %cst_38 [2] : vector<1x4x256xf32> to vector<1x4xf32>
      %58 = vector.shape_cast %57 : vector<1x4xf32> to vector<1x4x1xf32>
      %cst_39 = arith.constant dense<0xFF800000> : vector<4x1xf32>
      %59 = vector.multi_reduction <maximumf>, %58, %cst_39 [0] : vector<1x4x1xf32> to vector<4x1xf32>
      %60 = vector.shape_cast %59 : vector<4x1xf32> to vector<1x4x1xf32>
      %61 = vector.broadcast %60 : vector<1x4x1xf32> to vector<1x4x256xf32>
      %62 = arith.subf %56, %61 : vector<1x4x256xf32>
      %63 = math.exp %62 : vector<1x4x256xf32>
      %cst_40 = arith.constant dense<0.000000e+00> : vector<1x4xf32>
      %64 = vector.multi_reduction <add>, %63, %cst_40 [2] : vector<1x4x256xf32> to vector<1x4xf32>
      %65 = vector.shape_cast %64 : vector<1x4xf32> to vector<1x4x1xf32>
      %cst_41 = arith.constant dense<0.000000e+00> : vector<4x1xf32>
      %66 = vector.multi_reduction <add>, %65, %cst_41 [0] : vector<1x4x1xf32> to vector<4x1xf32>
      %67 = vector.shape_cast %66 : vector<4x1xf32> to vector<1x4x1xf32>
      %68 = vector.broadcast %67 : vector<1x4x1xf32> to vector<1x4x256xf32>
      %69 = arith.divf %63, %68 : vector<1x4x256xf32>
      %cst_42 = arith.constant dense<0.000000e+00> : vector<1x256xf32>
      %70 = vector.multi_reduction <add>, %69, %cst_42 [1] : vector<1x4x256xf32> to vector<1x256xf32>
      %cst_43 = arith.constant 4.000000e+00 : f32
      %71 = vector.broadcast %cst_43 : f32 to vector<1x256xf32>
      %72 = arith.divf %70, %71 : vector<1x256xf32>
      %73 = vector.shape_cast %72 : vector<1x256xf32> to vector<1x1x256xf32>
      %c0_44 = arith.constant 0 : index
      %c0_45 = arith.constant 0 : index
      %c0_46 = arith.constant 0 : index
      %74 = vector.load %arg6[%c0_44, %c0_45, %c0_46] : memref<1x1x256xf32, #tpu.memory_space<vmem>>, vector<1x1x256xf32>
      tpu.vector_store %arg6[%c0_44, %c0_45, %c0_46], %73 {strides = array<i32>} : memref<1x1x256xf32, #tpu.memory_space<vmem>>, vector<1x1x256xf32>,
    } else {
    }
    return
  }
  func.func @transform_0(%arg0: i32, %arg1: i32) -> (i32, i32, i32) {
    %c0_i32 = arith.constant 0 : i32
    %c0_i32_0 = arith.constant 0 : i32
    return %arg0, %arg1, %c0_i32 : i32, i32, i32
  }
  func.func @transform_1(%arg0: i32, %arg1: i32) -> (i32, i32) {
    %c0_i32 = arith.constant 0 : i32
    %c0_i32_0 = arith.constant 0 : i32
    %c0_i32_1 = arith.constant 0 : i32
    return %c0_i32, %c0_i32_0 : i32, i32
  }
  func.func @transform_2(%arg0: i32, %arg1: i32) -> (i32, i32) {
    %c0_i32 = arith.constant 0 : i32
    %c0_i32_0 = arith.constant 0 : i32
    %c0_i32_1 = arith.constant 0 : i32
    return %c0_i32, %c0_i32_0 : i32, i32
  }
  func.func @transform_3(%arg0: i32, %arg1: i32) -> (i32, i32, i32) {
    %c0_i32 = arith.constant 0 : i32
    %c0_i32_0 = arith.constant 0 : i32
    %c0_i32_1 = arith.constant 0 : i32
    return %arg0, %c0_i32, %c0_i32_0 : i32, i32, i32
  }
  func.func @transform_4(%arg0: i32, %arg1: i32) -> (i32, i32, i32) {
    %c0_i32 = arith.constant 0 : i32
    %c0_i32_0 = arith.constant 0 : i32
    %c0_i32_1 = arith.constant 0 : i32
    return %arg0, %c0_i32, %c0_i32_0 : i32, i32, i32
  }
}

</mosaic_0001>

<llo_original>
// kernel: tpu_custom_call.1
$region0: #{tpu_custom_call.1}
  #allocation0 [shape = 'u32[]', space=smem, size = 0x4, offset = 0x4, fixed_abs, tag = 'smem constant byte address 0x4 - core index']
  #allocation1 [shape = 'u32[144,128]{1,0:T(1,128)}', space=vmem, size = 0x12000, scoped, tag = 'internal scratch']
  #allocation2 [shape = 'f32[1,8,256]{2,1,0:T(8,128)}', space=vmem, size = 0x2000, scoped, tag = 'scratch operand']
  #allocation3 [shape = 'f32[1,1]{1,0:T(1,128)}', space=vmem, size = 0x200, scoped, tag = 'scratch operand']
  #allocation4 [shape = 'f32[1,1]{1,0:T(1,128)}', space=vmem, size = 0x200, scoped, tag = 'scratch operand']
  #allocation5 [shape = 'f32[1,128]{1,0:T(1,128)}', space=vmem, size = 0x200, scoped, tag = 'scratch operand']
  %s0 = inlined_call_operand.hbm [shape: f32[2,256,128], index: 0, kind: input, shape index: {}]
  %s1 = inlined_call_operand.hbm [shape: f32[128,256], index: 1, kind: input, shape index: {}]
  %s2 = inlined_call_operand.vmem [shape: f32[128,8], index: 2, kind: input, shape index: {}]
  %s3 = inlined_call_operand.hbm [shape: f32[2,1,128], index: 3, kind: output, shape index: {0}]
  %s4 = inlined_call_operand.hbm [shape: f32[2,1,256], index: 4, kind: output, shape index: {1}]
  %5 = xla_tuple %s3, %s4
  %s6 = sld [smem:[#allocation0]]
  $region69: #{tpu_custom_call.1} parent=0
    _
  %s8 = ssub.s32 1, %s6
  %s9 = scalar_select 0, %s8, %s6
  $region1: #{tpu_custom_call.1} parent=0
    #allocation6 [shape = 'u8[262144]{0}', space=vmem, size = 0x40000, scoped, tag = 'input window, operand 0']
    #allocation7 [shape = 's32[2]{0}', space=sflag, size = 0x8, scoped, tag = 'scoped memory for tpu_custom_call.1']
    #allocation8 [shape = 's32[2]{0}', space=sflag, size = 0x8, scoped, tag = 'scoped memory for tpu_custom_call.1']
    #allocation9 [shape = 'u8[131072]{0}', space=vmem, size = 0x20000, scoped, tag = 'input window, operand 1, single buffered']
    #allocation10 [shape = 's32[1]{0}', space=sflag, size = 0x4, scoped, tag = 'scoped memory for tpu_custom_call.1']
    #allocation11 [shape = 'u8[1024]{0}', space=vmem, size = 0x400, scoped, tag = 'output window, operand 0']
    #allocation12 [shape = 'u8[2048]{0}', space=vmem, size = 0x800, scoped, tag = 'output window, operand 1']
    #allocation13 [shape = 's32[2]{0}', space=sflag, size = 0x8, scoped, tag = 'scoped memory for tpu_custom_call.1']
    %10 = vsyncpa [#allocation7], 0
    %s11 = scalar_lea.sflag [#allocation7], 1
    %12 = vsyncpa %s11, 0
    %13 = vsyncpa [#allocation10], 0
    %14 = vsyncpa [#allocation8], 0
    %s15 = scalar_lea.sflag [#allocation8], 1
    %16 = vsyncpa %s15, 0
    %17 = vsyncpa [#allocation13], 0
    %s18 = scalar_lea.sflag [#allocation13], 1
    %19 = vsyncpa %s18, 0
    loop: start=0, step=1, limit=4
    $region2: #{tpu_custom_call.1} parent=1 // loop_pre_header
      _
    $region3: #{tpu_custom_call.1} parent=1 // loop_header
      %s21 = sphi 0, %s25
      %p22 = scmp.ge.s32.totalorder %s21, 4
      %s28 = sphi 0, %s40
      %s29 = sphi 0, %s36
      %s30 = sphi 0, %s28
      %s31 = sphi 0, %s29
      %s32 = sphi 0, %s30
      %s33 = sphi 0, %s31
      %s45 = sphi 0, %s47
      %s48 = sphi 0, %s45
      %s49 = sphi 0, %s48
      %s65 = sphi 0, %s49
      %s69 = sphi 0, %s69
      %s71 = sphi 0, %s69
      %s72 = sphi 0, %s71
      %s86 = sphi 0, %s72
      %s90 = sphi 0, %s90
      %s92 = sphi 0, %s90
      %s93 = sphi 0, %s92
      %s107 = sphi 0, %s93
      %s113 = sphi 0, %s115
      %s116 = sphi 0, %s113
      %s117 = sphi 0, %s116
      %s133 = sphi 0, %s117
      %s139 = sphi 0, %s141
      %s142 = sphi 0, %s139
      %s143 = sphi 0, %s142
      %s159 = sphi 0, %s143
    $region4: #{tpu_custom_call.1} parent=1 // loop_header_branch
      %24 = sbr.rel (%p22) target = $region8
    $region5: #{tpu_custom_call.1} parent=1 // loop_body
      %s26 = ssub.s32 %s21, 1
      %s27 = ssub.s32 %s21, 2
      %s34 = sadd.s32 1, %s29
      %p35 = scmp.ge.s32.totalorder %s34, 1
      %s36 = scalar_select %p35, 0, %s34
      %s37 = sadd.s32 1, %s28
      %s38 = scalar_select %p35, %s37, %s28
      %p39 = scmp.ge.s32.totalorder %s38, 2
      %s40 = scalar_select %p39, 0, %s38
      %s41 = ssub.s32 %s28, %s40
      %s42 = ssub.s32 %s29, %s36
      %s43 = sor.u32 %s41, %s42
      %p44 = scmp.eq.s32.totalorder %s43, 0
      %s46 = sadd.s32 %s45, 1
      %s47 = scalar_select %p44, %s45, %s46
      %p50 = pneg %p44
      %p51 = scmp.eq.s32.totalorder %s21, 1
      %p52 = por %p50, %p51
      %p53 = scmp.ne.s32.totalorder %s45, %s48
      %p54 = scmp.eq.s32.totalorder %s21, 0
      %p55 = por %p53, %p54
      %p56 = scmp.ne.s32.totalorder %s45, %s48
      %p57 = scmp.eq.s32.totalorder %s26, 1
      %p58 = por %p56, %p57
      %p59 = scmp.ne.s32.totalorder %s48, %s49
      %p60 = scmp.eq.s32.totalorder %s26, 0
      %p61 = por %p59, %p60
      %p62 = scmp.ne.s32.totalorder %s48, %s49
      %p63 = scmp.eq.s32.totalorder %s27, 1
      %p64 = por %p62, %p63
      %p66 = scmp.ne.s32.totalorder %s49, %s65
      %p67 = scmp.eq.s32.totalorder %s27, 0
      %p68 = por %p66, %p67
      %s70 = sadd.s32 %s69, 1
      %p73 = scmp.eq.s32.totalorder %s21, 1
      %p74 = scmp.ne.s32.totalorder %s69, %s71
      %p75 = scmp.eq.s32.totalorder %s21, 0
      %p76 = por %p74, %p75
      %p77 = scmp.ne.s32.totalorder %s69, %s71
      %p78 = scmp.eq.s32.totalorder %s26, 1
      %p79 = por %p77, %p78
      %p80 = scmp.ne.s32.totalorder %s71, %s72
      %p81 = scmp.eq.s32.totalorder %s26, 0
      %p82 = por %p80, %p81
      %p83 = scmp.ne.s32.totalorder %s71, %s72
      %p84 = scmp.eq.s32.totalorder %s27, 1
      %p85 = por %p83, %p84
      %p87 = scmp.ne.s32.totalorder %s72, %s86
      %p88 = scmp.eq.s32.totalorder %s27, 0
      %p89 = por %p87, %p88
      %s91 = sadd.s32 %s90, 1
      %p94 = scmp.eq.s32.totalorder %s21, 1
      %p95 = scmp.ne.s32.totalorder %s90, %s92
      %p96 = scmp.eq.s32.totalorder %s21, 0
      %p97 = por %p95, %p96
      %p98 = scmp.ne.s32.totalorder %s90, %s92
      %p99 = scmp.eq.s32.totalorder %s26, 1
      %p100 = por %p98, %p99
      %p101 = scmp.ne.s32.totalorder %s92, %s93
      %p102 = scmp.eq.s32.totalorder %s26, 0
      %p103 = por %p101, %p102
      %p104 = scmp.ne.s32.totalorder %s92, %s93
      %p105 = scmp.eq.s32.totalorder %s27, 1
      %p106 = por %p104, %p105
      %p108 = scmp.ne.s32.totalorder %s93, %s107
      %p109 = scmp.eq.s32.totalorder %s27, 0
      %p110 = por %p108, %p109
      %s111 = ssub.s32 %s28, %s40
      %p112 = scmp.eq.s32.totalorder %s111, 0
      %s114 = sadd.s32 %s113, 1
      %s115 = scalar_select %p112, %s113, %s114
      %p118 = pneg %p112
      %p119 = scmp.eq.s32.totalorder %s21, 1
      %p120 = por %p118, %p119
      %p121 = scmp.ne.s32.totalorder %s113, %s116
      %p122 = scmp.eq.s32.totalorder %s21, 0
      %p123 = por %p121, %p122
      %p124 = scmp.ne.s32.totalorder %s113, %s116
      %p125 = scmp.eq.s32.totalorder %s26, 1
      %p126 = por %p124, %p125
      %p127 = scmp.ne.s32.totalorder %s116, %s117
      %p128 = scmp.eq.s32.totalorder %s26, 0
      %p129 = por %p127, %p128
      %p130 = scmp.ne.s32.totalorder %s116, %s117
      %p131 = scmp.eq.s32.totalorder %s27, 1
      %p132 = por %p130, %p131
      %p134 = scmp.ne.s32.totalorder %s117, %s133
      %p135 = scmp.eq.s32.totalorder %s27, 0
      %p136 = por %p134, %p135
      %s137 = ssub.s32 %s28, %s40
      %p138 = scmp.eq.s32.totalorder %s137, 0
      %s140 = sadd.s32 %s139, 1
      %s141 = scalar_select %p138, %s139, %s140
      %p144 = pneg %p138
      %p145 = scmp.eq.s32.totalorder %s21, 1
      %p146 = por %p144, %p145
      %p147 = scmp.ne.s32.totalorder %s139, %s142
      %p148 = scmp.eq.s32.totalorder %s21, 0
      %p149 = por %p147, %p148
      %p150 = scmp.ne.s32.totalorder %s139, %s142
      %p151 = scmp.eq.s32.totalorder %s26, 1
      %p152 = por %p150, %p151
      %p153 = scmp.ne.s32.totalorder %s142, %s143
      %p154 = scmp.eq.s32.totalorder %s26, 0
      %p155 = por %p153, %p154
      %p156 = scmp.ne.s32.totalorder %s142, %s143
      %p157 = scmp.eq.s32.totalorder %s27, 1
      %p158 = por %p156, %p157
      %p160 = scmp.ne.s32.totalorder %s143, %s159
      %p161 = scmp.eq.s32.totalorder %s27, 0
      %p162 = por %p160, %p161
      %p163 = scmp.le.s32.totalorder 1, %s21
      %p164 = scmp.lt.s32.totalorder %s21, 3
      %p165 = pnand %p163, %p164
      %p166 = pneg %p165
      // Predicated region
      $region9: #{tpu_custom_call.1} parent=5 // pred_check
        _
      $region10: #{tpu_custom_call.1} parent=5 // pred_check_branch
        %168 = sbr.rel (%p165) target = $region12
      $region11: #{tpu_custom_call.1} parent=5 // pred_region
        %s169 = ssub.s32 %s21, 1
        // Predicated region
        $region13: #{tpu_custom_call.1} parent=11 // pred_check
          %p170 = pneg %p82
        $region14: #{tpu_custom_call.1} parent=11 // pred_check_branch
          %172 = sbr.rel (%p170) target = $region16
        $region15: #{tpu_custom_call.1} parent=11 // pred_region
          %s174 = ssub.s32 4096, 4096
          %175 = vsyncadd [#allocation10], %s174
          %s176 = sshll.u32 [#allocation9], 4
          %s177 = int_to_ptr.vmem [resolvable:$true] %s176
          %182 = dma.hbm_to_vmem [thread:$0]  %s1, 4096, %s177, [#allocation10], 256, 256, 16
        $region16: #{tpu_custom_call.1} parent=11 // pred_fallthru
          _
        // Predicated region
        $region17: #{tpu_custom_call.1} parent=11 // pred_check
          %p183 = pneg %p103
        $region18: #{tpu_custom_call.1} parent=11 // pred_check_branch
          %185 = sbr.rel (%p183) target = $region20
        $region19: #{tpu_custom_call.1} parent=11 // pred_region
          _
        $region20: #{tpu_custom_call.1} parent=11 // pred_fallthru
          _
      $region12: #{tpu_custom_call.1} parent=5 // pred_fallthru
        _
      %p186 = scmp.lt.s32.totalorder %s21, 2
      // Predicated region
      $region21: #{tpu_custom_call.1} parent=5 // pred_check
        %p187 = pneg %p186
      $region22: #{tpu_custom_call.1} parent=5 // pred_check_branch
        %189 = sbr.rel (%p187) target = $region24
      $region23: #{tpu_custom_call.1} parent=5 // pred_region
        // Predicated region
        $region25: #{tpu_custom_call.1} parent=23 // pred_check
          %p190 = pneg %p55
        $region26: #{tpu_custom_call.1} parent=23 // pred_check_branch
          %192 = sbr.rel (%p190) target = $region28
        $region27: #{tpu_custom_call.1} parent=23 // pred_region
          %s193 = sand.u32 %s45, 1
          %s194 = scalar_lea.sflag [#allocation7], %s193
          %s195 = sand.u32 %s45, 1
          %s196 = smul.addr %s195, 256
          %s197 = scalar_lea.vmem [#allocation6], %s196
          %s198 = smul.u32 32, %s29
          %s200 = ssub.s32 4096, 4096
          %201 = vsyncadd %s194, %s200
          %s202 = smul.addr %s28, 32
          %s203 = sadd.s32 %s198, %s202
          %s204 = smul.addr %s203, 128
          %s205 = scalar_lea.hbm %s0, %s204
          %s206 = sshll.u32 %s197, 4
          %s207 = int_to_ptr.vmem [resolvable:$true] %s206
          %212 = dma.hbm_to_vmem [thread:$0]  %s205, 4096, %s207, %s194, 128, 128, 8
        $region28: #{tpu_custom_call.1} parent=23 // pred_fallthru
          _
      $region24: #{tpu_custom_call.1} parent=5 // pred_fallthru
        _
      %p213 = scmp.le.s32.totalorder 1, %s21
      %p214 = scmp.lt.s32.totalorder %s21, 3
      %p215 = pnand %p213, %p214
      %p216 = pneg %p215
      // Predicated region
      $region29: #{tpu_custom_call.1} parent=5 // pred_check
        _
      $region30: #{tpu_custom_call.1} parent=5 // pred_check_branch
        %218 = sbr.rel (%p215) target = $region32
      $region31: #{tpu_custom_call.1} parent=5 // pred_region
        %s219 = ssub.s32 %s21, 1
        %s220 = sand.u32 %s48, 1
        %s221 = scalar_lea.sflag [#allocation7], %s220
        %s222 = sand.u32 %s48, 1
        %s223 = smul.addr %s222, 256
        %s224 = scalar_lea.vmem [#allocation6], %s223
        // Predicated region
        $region33: #{tpu_custom_call.1} parent=31 // pred_check
          %p225 = pneg %p61
        $region34: #{tpu_custom_call.1} parent=31 // pred_check_branch
          %227 = sbr.rel (%p225) target = $region36
        $region35: #{tpu_custom_call.1} parent=31 // pred_region
          %228 = dma.done %s221, 4096
        $region36: #{tpu_custom_call.1} parent=31 // pred_fallthru
          _
        // Predicated region
        $region37: #{tpu_custom_call.1} parent=31 // pred_check
          %p229 = pneg %p82
        $region38: #{tpu_custom_call.1} parent=31 // pred_check_branch
          %231 = sbr.rel (%p229) target = $region40
        $region39: #{tpu_custom_call.1} parent=31 // pred_region
          %232 = dma.done [#allocation10], 4096
        $region40: #{tpu_custom_call.1} parent=31 // pred_fallthru
          _
        %s233 = sand.u32 %s48, 1
        %s234 = scalar_lea.sflag [#allocation7], %s233
        %s235 = sand.u32 %s48, 1
        %s236 = smul.addr %s235, 256
        %s237 = scalar_lea.vmem [#allocation6], %s236
        %p238 = pneg %p61
        %p239 = pneg %p58
        %p240 = pneg %p82
        %p241 = pneg %p79
        %p242 = pneg %p103
        %p243 = pneg %p100
        %p244 = pneg %p129
        %p245 = pneg %p126
        %s246 = sand.u32 %s116, 1
        %s247 = scalar_lea.sflag [#allocation8], %s246
        %s248 = sand.u32 %s116, 1
        %s249 = scalar_lea.vmem [#allocation11], %s248
        %p250 = pneg %p155
        %p251 = pneg %p152
        %s252 = sand.u32 %s142, 1
        %s253 = scalar_lea.sflag [#allocation13], %s252
        %s254 = sand.u32 %s142, 1
        %s255 = smul.addr %s254, 2
        %s256 = scalar_lea.vmem [#allocation12], %s255
        %s257 = smul.u32 32, %s31
        %p258 = scmp.eq.s32.totalorder %s31, 0
        // Predicated region
        $region41: #{tpu_custom_call.1} parent=31 // pred_check
          %p259 = pneg %p258
        $region42: #{tpu_custom_call.1} parent=31 // pred_check_branch
          %261 = sbr.rel (%p259) target = $region44
        $region43: #{tpu_custom_call.1} parent=31 // pred_region
          %vm262 = vcmask 0
          %263 = vst.msk [vmem:[#allocation3] sm:$0x1] %vm262, -inf
          %264 = vst.msk [vmem:[#allocation4] sm:$0x1] %vm262, 0.0
          %265 = vst [vmem:[#allocation5] sm:$0x1] 0.0
        $region44: #{tpu_custom_call.1} parent=31 // pred_fallthru
          _
        %v266 = vld [vmem:[%s224] sm:$0xff]
        %v267 = vld [vmem:[%s224 + $0x8] sm:$0xff]
        %v268 = vld [vmem:[%s224 + $0x10] sm:$0xff]
        %v269 = vld [vmem:[%s224 + $0x18] sm:$0xff]
        %v270 = vld [vmem:[%s224 + $0x20] sm:$0xff]
        %v271 = vld [vmem:[%s224 + $0x28] sm:$0xff]
        %v272 = vld [vmem:[%s224 + $0x30] sm:$0xff]
        %v273 = vld [vmem:[%s224 + $0x38] sm:$0xff]
        %v274 = vld [vmem:[%s224 + $0x40] sm:$0xff]
        %v275 = vld [vmem:[%s224 + $0x48] sm:$0xff]
        %v276 = vld [vmem:[%s224 + $0x50] sm:$0xff]
        %v277 = vld [vmem:[%s224 + $0x58] sm:$0xff]
        %v278 = vld [vmem:[%s224 + $0x60] sm:$0xff]
        %v279 = vld [vmem:[%s224 + $0x68] sm:$0xff]
        %v280 = vld [vmem:[%s224 + $0x70] sm:$0xff]
        %v281 = vld [vmem:[%s224 + $0x78] sm:$0xff]
        %v282 = vld [vmem:[%s224 + $0x80] sm:$0xff]
        %v283 = vld [vmem:[%s224 + $0x88] sm:$0xff]
        %v284 = vld [vmem:[%s224 + $0x90] sm:$0xff]
        %v285 = vld [vmem:[%s224 + $0x98] sm:$0xff]
        %v286 = vld [vmem:[%s224 + $0xa0] sm:$0xff]
        %v287 = vld [vmem:[%s224 + $0xa8] sm:$0xff]
        %v288 = vld [vmem:[%s224 + $0xb0] sm:$0xff]
        %v289 = vld [vmem:[%s224 + $0xb8] sm:$0xff]
        %v290 = vld [vmem:[%s224 + $0xc0] sm:$0xff]
        %v291 = vld [vmem:[%s224 + $0xc8] sm:$0xff]
        %v292 = vld [vmem:[%s224 + $0xd0] sm:$0xff]
        %v293 = vld [vmem:[%s224 + $0xd8] sm:$0xff]
        %v294 = vld [vmem:[%s224 + $0xe0] sm:$0xff]
        %v295 = vld [vmem:[%s224 + $0xe8] sm:$0xff]
        %v296 = vld [vmem:[%s224 + $0xf0] sm:$0xff]
        %v297 = vld [vmem:[%s224 + $0xf8] sm:$0xff]
        %v298 = vld [vmem:[#allocation9] sm:$0xff]
        %v299 = vld [vmem:[#allocation9 + $0x8] sm:$0xff]
        %v300 = vld [vmem:[#allocation9 + $0x10] sm:$0xff]
        %v301 = vld [vmem:[#allocation9 + $0x18] sm:$0xff]
        %v302 = vld [vmem:[#allocation9 + $0x20] sm:$0xff]
        %v303 = vld [vmem:[#allocation9 + $0x28] sm:$0xff]
        %v304 = vld [vmem:[#allocation9 + $0x30] sm:$0xff]
        %v305 = vld [vmem:[#allocation9 + $0x38] sm:$0xff]
        %v306 = vld [vmem:[#allocation9 + $0x40] sm:$0xff]
        %v307 = vld [vmem:[#allocation9 + $0x48] sm:$0xff]
        %v308 = vld [vmem:[#allocation9 + $0x50] sm:$0xff]
        %v309 = vld [vmem:[#allocation9 + $0x58] sm:$0xff]
        %v310 = vld [vmem:[#allocation9 + $0x60] sm:$0xff]
        %v311 = vld [vmem:[#allocation9 + $0x68] sm:$0xff]
        %v312 = vld [vmem:[#allocation9 + $0x70] sm:$0xff]
        %v313 = vld [vmem:[#allocation9 + $0x78] sm:$0xff]
        %v314 = vld [vmem:[#allocation9 + $0x80] sm:$0xff]
        %v315 = vld [vmem:[#allocation9 + $0x88] sm:$0xff]
        %v316 = vld [vmem:[#allocation9 + $0x90] sm:$0xff]
        %v317 = vld [vmem:[#allocation9 + $0x98] sm:$0xff]
        %v318 = vld [vmem:[#allocation9 + $0xa0] sm:$0xff]
        %v319 = vld [vmem:[#allocation9 + $0xa8] sm:$0xff]
        %v320 = vld [vmem:[#allocation9 + $0xb0] sm:$0xff]
        %v321 = vld [vmem:[#allocation9 + $0xb8] sm:$0xff]
        %v322 = vld [vmem:[#allocation9 + $0xc0] sm:$0xff]
        %v323 = vld [vmem:[#allocation9 + $0xc8] sm:$0xff]
        %v324 = vld [vmem:[#allocation9 + $0xd0] sm:$0xff]
        %v325 = vld [vmem:[#allocation9 + $0xd8] sm:$0xff]
        %v326 = vld [vmem:[#allocation9 + $0xe0] sm:$0xff]
        %v327 = vld [vmem:[#allocation9 + $0xe8] sm:$0xff]
        %v328 = vld [vmem:[#allocation9 + $0xf0] sm:$0xff]
        %v329 = vld [vmem:[#allocation9 + $0xf8] sm:$0xff]
        %330 = vmatprep.subr.mxu0 %v299
        %331 = vmatpush1.msra.mxu0 %v298
        %332 = vmatprep.subr.mxu0 %v301
        %333 = vmatpush1.msra.mxu0 %v300
        %334 = vmatprep.subr.mxu0 %v303
        %335 = vmatpush1.msra.mxu0 %v302
        %336 = vmatprep.subr.mxu0 %v305
        %337 = vmatpush1.msra.mxu0 %v304
        %338 = vmatprep.subr.mxu0 %v307
        %339 = vmatpush1.msra.mxu0 %v306
        %340 = vmatprep.subr.mxu0 %v309
        %341 = vmatpush1.msra.mxu0 %v308
        %342 = vmatprep.subr.mxu0 %v311
        %343 = vmatpush1.msra.mxu0 %v310
        %344 = vmatprep.subr.mxu0 %v313
        %345 = vmatpush1.msra.mxu0 %v312
        %346 = vmatprep.subr.mxu0 %v315
        %347 = vmatpush1.msra.mxu0 %v314
        %348 = vmatprep.subr.mxu0 %v317
        %349 = vmatpush1.msra.mxu0 %v316
        %350 = vmatprep.subr.mxu0 %v319
        %351 = vmatpush1.msra.mxu0 %v318
        %352 = vmatprep.subr.mxu0 %v321
        %353 = vmatpush1.msra.mxu0 %v320
        %354 = vmatprep.subr.mxu0 %v323
        %355 = vmatpush1.msra.mxu0 %v322
        %356 = vmatprep.subr.mxu0 %v325
        %357 = vmatpush1.msra.mxu0 %v324
        %358 = vmatprep.subr.mxu0 %v327
        %359 = vmatpush1.msra.mxu0 %v326
        %360 = vmatprep.subr.mxu0 %v329
        %361 = vmatpush1.msra.mxu0 %v328
        %362 = vmatprep.subr.mxu0 0.0
        %363 = vmatpush1.msra.mxu0 0.0
        %364 = vmatprep.subr.mxu0 0.0
        %365 = vmatpush1.msra.mxu0 0.0
        %366 = vmatprep.subr.mxu0 0.0
        %367 = vmatpush1.msra.mxu0 0.0
        %368 = vmatprep.subr.mxu0 0.0
        %369 = vmatpush1.msra.mxu0 0.0
        %370 = vmatprep.subr.mxu0 0.0
        %371 = vmatpush1.msra.mxu0 0.0
        %372 = vmatprep.subr.mxu0 0.0
        %373 = vmatpush1.msra.mxu0 0.0
        %374 = vmatprep.subr.mxu0 0.0
        %375 = vmatpush1.msra.mxu0 0.0
        %376 = vmatprep.subr.mxu0 0.0
        %377 = vmatpush1.msra.mxu0 0.0
        %378 = vmatprep.subr.mxu0 0.0
        %379 = vmatpush1.msra.mxu0 0.0
        %380 = vmatprep.subr.mxu0 0.0
        %381 = vmatpush1.msra.mxu0 0.0
        %382 = vmatprep.subr.mxu0 0.0
        %383 = vmatpush1.msra.mxu0 0.0
        %384 = vmatprep.subr.mxu0 0.0
        %385 = vmatpush1.msra.mxu0 0.0
        %386 = vmatprep.subr.mxu0 0.0
        %387 = vmatpush1.msra.mxu0 0.0
        %388 = vmatprep.subr.mxu0 0.0
        %389 = vmatpush1.msra.mxu0 0.0
        %390 = vmatprep.subr.mxu0 0.0
        %391 = vmatpush1.msra.mxu0 0.0
        %392 = vmatprep.subr.mxu0 0.0
        %393 = vmatpush1.msra.mxu0 0.0
        %394 = vmatprep.mubr.f32.mxu0 0.0
        %395 = vmatmul.mubr.f32.gmra.mrb[0].mxu0 %v266
        %v396 = vpop.f32.mrb[0].mxu0
        %v397 = vadd.f32 0.0, %v396
        %v398 = vpop.f32.mrb[0].mxu0
        %v399 = vadd.f32 0.0, %v398
        %400 = vmatprep.mubr.f32.mxu0 0.0
        %401 = vmatmul.mubr.f32.gmra.mrb[0].mxu0 %v267
        %v402 = vpop.f32.mrb[0].mxu0
        %v403 = vadd.f32 0.0, %v402
        %v404 = vpop.f32.mrb[0].mxu0
        %v405 = vadd.f32 0.0, %v404
        %406 = vmatprep.mubr.f32.mxu0 0.0
        %407 = vmatmul.mubr.f32.gmra.mrb[0].mxu0 %v268
        %v408 = vpop.f32.mrb[0].mxu0
        %v409 = vadd.f32 0.0, %v408
        %v410 = vpop.f32.mrb[0].mxu0
        %v411 = vadd.f32 0.0, %v410
        %412 = vmatprep.mubr.f32.mxu0 0.0
        %413 = vmatmul.mubr.f32.gmra.mrb[0].mxu0 %v269
        %v414 = vpop.f32.mrb[0].mxu0
        %v415 = vadd.f32 0.0, %v414
        %v416 = vpop.f32.mrb[0].mxu0
        %v417 = vadd.f32 0.0, %v416
        %418 = vmatprep.mubr.f32.mxu0 0.0
        %419 = vmatmul.mubr.f32.gmra.mrb[0].mxu0 %v270
        %v420 = vpop.f32.mrb[0].mxu0
        %v421 = vadd.f32 0.0, %v420
        %v422 = vpop.f32.mrb[0].mxu0
        %v423 = vadd.f32 0.0, %v422
        %424 = vmatprep.mubr.f32.mxu0 0.0
        %425 = vmatmul.mubr.f32.gmra.mrb[0].mxu0 %v271
        %v426 = vpop.f32.mrb[0].mxu0
        %v427 = vadd.f32 0.0, %v426
        %v428 = vpop.f32.mrb[0].mxu0
        %v429 = vadd.f32 0.0, %v428
        %430 = vmatprep.mubr.f32.mxu0 0.0
        %431 = vmatmul.mubr.f32.gmra.mrb[0].mxu0 %v272
        %v432 = vpop.f32.mrb[0].mxu0
        %v433 = vadd.f32 0.0, %v432
        %v434 = vpop.f32.mrb[0].mxu0
        %v435 = vadd.f32 0.0, %v434
        %436 = vmatprep.mubr.f32.mxu0 0.0
        %437 = vmatmul.mubr.f32.gmra.mrb[0].mxu0 %v273
        %v438 = vpop.f32.mrb[0].mxu0
        %v439 = vadd.f32 0.0, %v438
        %v440 = vpop.f32.mrb[0].mxu0
        %v441 = vadd.f32 0.0, %v440
        %442 = vmatprep.mubr.f32.mxu0 0.0
        %443 = vmatmul.mubr.f32.gmra.mrb[0].mxu0 %v274
        %v444 = vpop.f32.mrb[0].mxu0
        %v445 = vadd.f32 0.0, %v444
        %v446 = vpop.f32.mrb[0].mxu0
        %v447 = vadd.f32 0.0, %v446
        %448 = vmatprep.mubr.f32.mxu0 0.0
        %449 = vmatmul.mubr.f32.gmra.mrb[0].mxu0 %v275
        %v450 = vpop.f32.mrb[0].mxu0
        %v451 = vadd.f32 0.0, %v450
        %v452 = vpop.f32.mrb[0].mxu0
        %v453 = vadd.f32 0.0, %v452
        %454 = vmatprep.mubr.f32.mxu0 0.0
        %455 = vmatmul.mubr.f32.gmra.mrb[0].mxu0 %v276
        %v456 = vpop.f32.mrb[0].mxu0
        %v457 = vadd.f32 0.0, %v456
        %v458 = vpop.f32.mrb[0].mxu0
        %v459 = vadd.f32 0.0, %v458
        %460 = vmatprep.mubr.f32.mxu0 0.0
        %461 = vmatmul.mubr.f32.gmra.mrb[0].mxu0 %v277
        %v462 = vpop.f32.mrb[0].mxu0
        %v463 = vadd.f32 0.0, %v462
        %v464 = vpop.f32.mrb[0].mxu0
        %v465 = vadd.f32 0.0, %v464
        %466 = vmatprep.mubr.f32.mxu0 0.0
        %467 = vmatmul.mubr.f32.gmra.mrb[0].mxu0 %v278
        %v468 = vpop.f32.mrb[0].mxu0
        %v469 = vadd.f32 0.0, %v468
        %v470 = vpop.f32.mrb[0].mxu0
        %v471 = vadd.f32 0.0, %v470
        %472 = vmatprep.mubr.f32.mxu0 0.0
        %473 = vmatmul.mubr.f32.gmra.mrb[0].mxu0 %v279
        %v474 = vpop.f32.mrb[0].mxu0
        %v475 = vadd.f32 0.0, %v474
        %v476 = vpop.f32.mrb[0].mxu0
        %v477 = vadd.f32 0.0, %v476
        %478 = vmatprep.mubr.f32.mxu0 0.0
        %479 = vmatmul.mubr.f32.gmra.mrb[0].mxu0 %v280
        %v480 = vpop.f32.mrb[0].mxu0
        %v481 = vadd.f32 0.0, %v480
        %v482 = vpop.f32.mrb[0].mxu0
        %v483 = vadd.f32 0.0, %v482
        %484 = vmatprep.mubr.f32.mxu0 0.0
        %485 = vmatmul.mubr.f32.gmra.mrb[0].mxu0 %v281
        %v486 = vpop.f32.mrb[0].mxu0
        %v487 = vadd.f32 0.0, %v486
        %v488 = vpop.f32.mrb[0].mxu0
        %v489 = vadd.f32 0.0, %v488
        %490 = vmatprep.mubr.f32.mxu0 0.0
        %491 = vmatmul.mubr.f32.gmra.mrb[0].mxu0 %v282
        %v492 = vpop.f32.mrb[0].mxu0
        %v493 = vadd.f32 0.0, %v492
        %v494 = vpop.f32.mrb[0].mxu0
        %v495 = vadd.f32 0.0, %v494
        %496 = vmatprep.mubr.f32.mxu0 0.0
        %497 = vmatmul.mubr.f32.gmra.mrb[0].mxu0 %v283
        %v498 = vpop.f32.mrb[0].mxu0
        %v499 = vadd.f32 0.0, %v498
        %v500 = vpop.f32.mrb[0].mxu0
        %v501 = vadd.f32 0.0, %v500
        %502 = vmatprep.mubr.f32.mxu0 0.0
        %503 = vmatmul.mubr.f32.gmra.mrb[0].mxu0 %v284
        %v504 = vpop.f32.mrb[0].mxu0
        %v505 = vadd.f32 0.0, %v504
        %v506 = vpop.f32.mrb[0].mxu0
        %v507 = vadd.f32 0.0, %v506
        %508 = vmatprep.mubr.f32.mxu0 0.0
        %509 = vmatmul.mubr.f32.gmra.mrb[0].mxu0 %v285
        %v510 = vpop.f32.mrb[0].mxu0
        %v511 = vadd.f32 0.0, %v510
        %v512 = vpop.f32.mrb[0].mxu0
        %v513 = vadd.f32 0.0, %v512
        %514 = vmatprep.mubr.f32.mxu0 0.0
        %515 = vmatmul.mubr.f32.gmra.mrb[0].mxu0 %v286
        %v516 = vpop.f32.mrb[0].mxu0
        %v517 = vadd.f32 0.0, %v516
        %v518 = vpop.f32.mrb[0].mxu0
        %v519 = vadd.f32 0.0, %v518
        %520 = vmatprep.mubr.f32.mxu0 0.0
        %521 = vmatmul.mubr.f32.gmra.mrb[0].mxu0 %v287
        %v522 = vpop.f32.mrb[0].mxu0
        %v523 = vadd.f32 0.0, %v522
        %v524 = vpop.f32.mrb[0].mxu0
        %v525 = vadd.f32 0.0, %v524
        %526 = vmatprep.mubr.f32.mxu0 0.0
        %527 = vmatmul.mubr.f32.gmra.mrb[0].mxu0 %v288
        %v528 = vpop.f32.mrb[0].mxu0
        %v529 = vadd.f32 0.0, %v528
        %v530 = vpop.f32.mrb[0].mxu0
        %v531 = vadd.f32 0.0, %v530
        %532 = vmatprep.mubr.f32.mxu0 0.0
        %533 = vmatmul.mubr.f32.gmra.mrb[0].mxu0 %v289
        %v534 = vpop.f32.mrb[0].mxu0
        %v535 = vadd.f32 0.0, %v534
        %v536 = vpop.f32.mrb[0].mxu0
        %v537 = vadd.f32 0.0, %v536
        %538 = vmatprep.mubr.f32.mxu0 0.0
        %539 = vmatmul.mubr.f32.gmra.mrb[0].mxu0 %v290
        %v540 = vpop.f32.mrb[0].mxu0
        %v541 = vadd.f32 0.0, %v540
        %v542 = vpop.f32.mrb[0].mxu0
        %v543 = vadd.f32 0.0, %v542
        %544 = vmatprep.mubr.f32.mxu0 0.0
        %545 = vmatmul.mubr.f32.gmra.mrb[0].mxu0 %v291
        %v546 = vpop.f32.mrb[0].mxu0
        %v547 = vadd.f32 0.0, %v546
        %v548 = vpop.f32.mrb[0].mxu0
        %v549 = vadd.f32 0.0, %v548
        %550 = vmatprep.mubr.f32.mxu0 0.0
        %551 = vmatmul.mubr.f32.gmra.mrb[0].mxu0 %v292
        %v552 = vpop.f32.mrb[0].mxu0
        %v553 = vadd.f32 0.0, %v552
        %v554 = vpop.f32.mrb[0].mxu0
        %v555 = vadd.f32 0.0, %v554
        %556 = vmatprep.mubr.f32.mxu0 0.0
        %557 = vmatmul.mubr.f32.gmra.mrb[0].mxu0 %v293
        %v558 = vpop.f32.mrb[0].mxu0
        %v559 = vadd.f32 0.0, %v558
        %v560 = vpop.f32.mrb[0].mxu0
        %v561 = vadd.f32 0.0, %v560
        %562 = vmatprep.mubr.f32.mxu0 0.0
        %563 = vmatmul.mubr.f32.gmra.mrb[0].mxu0 %v294
        %v564 = vpop.f32.mrb[0].mxu0
        %v565 = vadd.f32 0.0, %v564
        %v566 = vpop.f32.mrb[0].mxu0
        %v567 = vadd.f32 0.0, %v566
        %568 = vmatprep.mubr.f32.mxu0 0.0
        %569 = vmatmul.mubr.f32.gmra.mrb[0].mxu0 %v295
        %v570 = vpop.f32.mrb[0].mxu0
        %v571 = vadd.f32 0.0, %v570
        %v572 = vpop.f32.mrb[0].mxu0
        %v573 = vadd.f32 0.0, %v572
        %574 = vmatprep.mubr.f32.mxu0 0.0
        %575 = vmatmul.mubr.f32.gmra.mrb[0].mxu0 %v296
        %v576 = vpop.f32.mrb[0].mxu0
        %v577 = vadd.f32 0.0, %v576
        %v578 = vpop.f32.mrb[0].mxu0
        %v579 = vadd.f32 0.0, %v578
        %580 = vmatprep.mubr.f32.mxu0 0.0
        %581 = vmatmul.mubr.f32.gmra.mrb[0].mxu0 %v297
        %v582 = vpop.f32.mrb[0].mxu0
        %v583 = vadd.f32 0.0, %v582
        %v584 = vpop.f32.mrb[0].mxu0
        %v585 = vadd.f32 0.0, %v584
        %586 = vdwg.mxu0
        %v587 = vtanh.pop %v397
        %v588 = vtanh.pop %v403
        %v589 = vtanh.pop %v409
        %v590 = vtanh.pop %v415
        %v591 = vtanh.pop %v421
        %v592 = vtanh.pop %v427
        %v593 = vtanh.pop %v433
        %v594 = vtanh.pop %v439
        %v595 = vtanh.pop %v445
        %v596 = vtanh.pop %v451
        %v597 = vtanh.pop %v457
        %v598 = vtanh.pop %v463
        %v599 = vtanh.pop %v469
        %v600 = vtanh.pop %v475
        %v601 = vtanh.pop %v481
        %v602 = vtanh.pop %v487
        %v603 = vtanh.pop %v493
        %v604 = vtanh.pop %v499
        %v605 = vtanh.pop %v505
        %v606 = vtanh.pop %v511
        %v607 = vtanh.pop %v517
        %v608 = vtanh.pop %v523
        %v609 = vtanh.pop %v529
        %v610 = vtanh.pop %v535
        %v611 = vtanh.pop %v541
        %v612 = vtanh.pop %v547
        %v613 = vtanh.pop %v553
        %v614 = vtanh.pop %v559
        %v615 = vtanh.pop %v565
        %v616 = vtanh.pop %v571
        %v617 = vtanh.pop %v577
        %v618 = vtanh.pop %v583
        %v619 = vxor.u32 %v399, 2147483648
        %v620 = vxor.u32 %v405, 2147483648
        %v621 = vxor.u32 %v411, 2147483648
        %v622 = vxor.u32 %v417, 2147483648
        %v623 = vxor.u32 %v423, 2147483648
        %v624 = vxor.u32 %v429, 2147483648
        %v625 = vxor.u32 %v435, 2147483648
        %v626 = vxor.u32 %v441, 2147483648
        %v627 = vxor.u32 %v447, 2147483648
        %v628 = vxor.u32 %v453, 2147483648
        %v629 = vxor.u32 %v459, 2147483648
        %v630 = vxor.u32 %v465, 2147483648
        %v631 = vxor.u32 %v471, 2147483648
        %v632 = vxor.u32 %v477, 2147483648
        %v633 = vxor.u32 %v483, 2147483648
        %v634 = vxor.u32 %v489, 2147483648
        %v635 = vxor.u32 %v495, 2147483648
        %v636 = vxor.u32 %v501, 2147483648
        %v637 = vxor.u32 %v507, 2147483648
        %v638 = vxor.u32 %v513, 2147483648
        %v639 = vxor.u32 %v519, 2147483648
        %v640 = vxor.u32 %v525, 2147483648
        %v641 = vxor.u32 %v531, 2147483648
        %v642 = vxor.u32 %v537, 2147483648
        %v643 = vxor.u32 %v543, 2147483648
        %v644 = vxor.u32 %v549, 2147483648
        %v645 = vxor.u32 %v555, 2147483648
        %v646 = vxor.u32 %v561, 2147483648
        %v647 = vxor.u32 %v567, 2147483648
        %v648 = vxor.u32 %v573, 2147483648
        %v649 = vxor.u32 %v579, 2147483648
        %v650 = vxor.u32 %v585, 2147483648
        %v651 = vmul.f32 %v619, 1.442695
        %v652 = vpow.pop %v651
        %v653 = vmul.f32 %v620, 1.442695
        %v654 = vpow.pop %v653
        %v655 = vmul.f32 %v621, 1.442695
        %v656 = vpow.pop %v655
        %v657 = vmul.f32 %v622, 1.442695
        %v658 = vpow.pop %v657
        %v659 = vmul.f32 %v623, 1.442695
        %v660 = vpow.pop %v659
        %v661 = vmul.f32 %v624, 1.442695
        %v662 = vpow.pop %v661
        %v663 = vmul.f32 %v625, 1.442695
        %v664 = vpow.pop %v663
        %v665 = vmul.f32 %v626, 1.442695
        %v666 = vpow.pop %v665
        %v667 = vmul.f32 %v627, 1.442695
        %v668 = vpow.pop %v667
        %v669 = vmul.f32 %v628, 1.442695
        %v670 = vpow.pop %v669
        %v671 = vmul.f32 %v629, 1.442695
        %v672 = vpow.pop %v671
        %v673 = vmul.f32 %v630, 1.442695
        %v674 = vpow.pop %v673
        %v675 = vmul.f32 %v631, 1.442695
        %v676 = vpow.pop %v675
        %v677 = vmul.f32 %v632, 1.442695
        %v678 = vpow.pop %v677
        %v679 = vmul.f32 %v633, 1.442695
        %v680 = vpow.pop %v679
        %v681 = vmul.f32 %v634, 1.442695
        %v682 = vpow.pop %v681
        %v683 = vmul.f32 %v635, 1.442695
        %v684 = vpow.pop %v683
        %v685 = vmul.f32 %v636, 1.442695
        %v686 = vpow.pop %v685
        %v687 = vmul.f32 %v637, 1.442695
        %v688 = vpow.pop %v687
        %v689 = vmul.f32 %v638, 1.442695
        %v690 = vpow.pop %v689
        %v691 = vmul.f32 %v639, 1.442695
        %v692 = vpow.pop %v691
        %v693 = vmul.f32 %v640, 1.442695
        %v694 = vpow.pop %v693
        %v695 = vmul.f32 %v641, 1.442695
        %v696 = vpow.pop %v695
        %v697 = vmul.f32 %v642, 1.442695
        %v698 = vpow.pop %v697
        %v699 = vmul.f32 %v643, 1.442695
        %v700 = vpow.pop %v699
        %v701 = vmul.f32 %v644, 1.442695
        %v702 = vpow.pop %v701
        %v703 = vmul.f32 %v645, 1.442695
        %v704 = vpow.pop %v703
        %v705 = vmul.f32 %v646, 1.442695
        %v706 = vpow.pop %v705
        %v707 = vmul.f32 %v647, 1.442695
        %v708 = vpow.pop %v707
        %v709 = vmul.f32 %v648, 1.442695
        %v710 = vpow.pop %v709
        %v711 = vmul.f32 %v649, 1.442695
        %v712 = vpow.pop %v711
        %v713 = vmul.f32 %v650, 1.442695
        %v714 = vpow.pop %v713
        %v715 = vadd.f32 %v652, 1.0
        %v716 = vadd.f32 %v654, 1.0
        %v717 = vadd.f32 %v656, 1.0
        %v718 = vadd.f32 %v658, 1.0
        %v719 = vadd.f32 %v660, 1.0
        %v720 = vadd.f32 %v662, 1.0
        %v721 = vadd.f32 %v664, 1.0
        %v722 = vadd.f32 %v666, 1.0
        %v723 = vadd.f32 %v668, 1.0
        %v724 = vadd.f32 %v670, 1.0
        %v725 = vadd.f32 %v672, 1.0
        %v726 = vadd.f32 %v674, 1.0
        %v727 = vadd.f32 %v676, 1.0
        %v728 = vadd.f32 %v678, 1.0
        %v729 = vadd.f32 %v680, 1.0
        %v730 = vadd.f32 %v682, 1.0
        %v731 = vadd.f32 %v684, 1.0
        %v732 = vadd.f32 %v686, 1.0
        %v733 = vadd.f32 %v688, 1.0
        %v734 = vadd.f32 %v690, 1.0
        %v735 = vadd.f32 %v692, 1.0
        %v736 = vadd.f32 %v694, 1.0
        %v737 = vadd.f32 %v696, 1.0
        %v738 = vadd.f32 %v698, 1.0
        %v739 = vadd.f32 %v700, 1.0
        %v740 = vadd.f32 %v702, 1.0
        %v741 = vadd.f32 %v704, 1.0
        %v742 = vadd.f32 %v706, 1.0
        %v743 = vadd.f32 %v708, 1.0
        %v744 = vadd.f32 %v710, 1.0
        %v745 = vadd.f32 %v712, 1.0
        %v746 = vadd.f32 %v714, 1.0
        %v747 = vrcp.pop %v715
        %v748 = vmul.f32 1.0, %v747
        %v749 = vrcp.pop %v716
        %v750 = vmul.f32 1.0, %v749
        %v751 = vrcp.pop %v717
        %v752 = vmul.f32 1.0, %v751
        %v753 = vrcp.pop %v718
        %v754 = vmul.f32 1.0, %v753
        %v755 = vrcp.pop %v719
        %v756 = vmul.f32 1.0, %v755
        %v757 = vrcp.pop %v720
        %v758 = vmul.f32 1.0, %v757
        %v759 = vrcp.pop %v721
        %v760 = vmul.f32 1.0, %v759
        %v761 = vrcp.pop %v722
        %v762 = vmul.f32 1.0, %v761
        %v763 = vrcp.pop %v723
        %v764 = vmul.f32 1.0, %v763
        %v765 = vrcp.pop %v724
        %v766 = vmul.f32 1.0, %v765
        %v767 = vrcp.pop %v725
        %v768 = vmul.f32 1.0, %v767
        %v769 = vrcp.pop %v726
        %v770 = vmul.f32 1.0, %v769
        %v771 = vrcp.pop %v727
        %v772 = vmul.f32 1.0, %v771
        %v773 = vrcp.pop %v728
        %v774 = vmul.f32 1.0, %v773
        %v775 = vrcp.pop %v729
        %v776 = vmul.f32 1.0, %v775
        %v777 = vrcp.pop %v730
        %v778 = vmul.f32 1.0, %v777
        %v779 = vrcp.pop %v731
        %v780 = vmul.f32 1.0, %v779
        %v781 = vrcp.pop %v732
        %v782 = vmul.f32 1.0, %v781
        %v783 = vrcp.pop %v733
        %v784 = vmul.f32 1.0, %v783
        %v785 = vrcp.pop %v734
        %v786 = vmul.f32 1.0, %v785
        %v787 = vrcp.pop %v735
        %v788 = vmul.f32 1.0, %v787
        %v789 = vrcp.pop %v736
        %v790 = vmul.f32 1.0, %v789
        %v791 = vrcp.pop %v737
        %v792 = vmul.f32 1.0, %v791
        %v793 = vrcp.pop %v738
        %v794 = vmul.f32 1.0, %v793
        %v795 = vrcp.pop %v739
        %v796 = vmul.f32 1.0, %v795
        %v797 = vrcp.pop %v740
        %v798 = vmul.f32 1.0, %v797
        %v799 = vrcp.pop %v741
        %v800 = vmul.f32 1.0, %v799
        %v801 = vrcp.pop %v742
        %v802 = vmul.f32 1.0, %v801
        %v803 = vrcp.pop %v743
        %v804 = vmul.f32 1.0, %v803
        %v805 = vrcp.pop %v744
        %v806 = vmul.f32 1.0, %v805
        %v807 = vrcp.pop %v745
        %v808 = vmul.f32 1.0, %v807
        %v809 = vrcp.pop %v746
        %v810 = vmul.f32 1.0, %v809
        %v811 = vmul.f32 %v587, %v748
        %v812 = vmul.f32 %v588, %v750
        %v813 = vmul.f32 %v589, %v752
        %v814 = vmul.f32 %v590, %v754
        %v815 = vmul.f32 %v591, %v756
        %v816 = vmul.f32 %v592, %v758
        %v817 = vmul.f32 %v593, %v760
        %v818 = vmul.f32 %v594, %v762
        %v819 = vmul.f32 %v595, %v764
        %v820 = vmul.f32 %v596, %v766
        %v821 = vmul.f32 %v597, %v768
        %v822 = vmul.f32 %v598, %v770
        %v823 = vmul.f32 %v599, %v772
        %v824 = vmul.f32 %v600, %v774
        %v825 = vmul.f32 %v601, %v776
        %v826 = vmul.f32 %v602, %v778
        %v827 = vmul.f32 %v603, %v780
        %v828 = vmul.f32 %v604, %v782
        %v829 = vmul.f32 %v605, %v784
        %v830 = vmul.f32 %v606, %v786
        %v831 = vmul.f32 %v607, %v788
        %v832 = vmul.f32 %v608, %v790
        %v833 = vmul.f32 %v609, %v792
        %v834 = vmul.f32 %v610, %v794
        %v835 = vmul.f32 %v611, %v796
        %v836 = vmul.f32 %v612, %v798
        %v837 = vmul.f32 %v613, %v800
        %v838 = vmul.f32 %v614, %v802
        %v839 = vmul.f32 %v615, %v804
        %v840 = vmul.f32 %v616, %v806
        %v841 = vmul.f32 %v617, %v808
        %v842 = vmul.f32 %v618, %v810
        %v843 = vld [vmem:[%s2] sm:$0xff]
        %v844 = vld [vmem:[%s2 + $0x8] sm:$0xff]
        %v845 = vld [vmem:[%s2 + $0x10] sm:$0xff]
        %v846 = vld [vmem:[%s2 + $0x18] sm:$0xff]
        %v847 = vld [vmem:[%s2 + $0x20] sm:$0xff]
        %v848 = vld [vmem:[%s2 + $0x28] sm:$0xff]
        %v849 = vld [vmem:[%s2 + $0x30] sm:$0xff]
        %v850 = vld [vmem:[%s2 + $0x38] sm:$0xff]
        %v851 = vld [vmem:[%s2 + $0x40] sm:$0xff]
        %v852 = vld [vmem:[%s2 + $0x48] sm:$0xff]
        %v853 = vld [vmem:[%s2 + $0x50] sm:$0xff]
        %v854 = vld [vmem:[%s2 + $0x58] sm:$0xff]
        %v855 = vld [vmem:[%s2 + $0x60] sm:$0xff]
        %v856 = vld [vmem:[%s2 + $0x68] sm:$0xff]
        %v857 = vld [vmem:[%s2 + $0x70] sm:$0xff]
        %v858 = vld [vmem:[%s2 + $0x78] sm:$0xff]
        %859 = vmatprep.subr.mxu0 0.0
        %860 = vmatpush1.msra.mxu0 %v843
        %861 = vmatprep.subr.mxu0 0.0
        %862 = vmatpush1.msra.mxu0 %v844
        %863 = vmatprep.subr.mxu0 0.0
        %864 = vmatpush1.msra.mxu0 %v845
        %865 = vmatprep.subr.mxu0 0.0
        %866 = vmatpush1.msra.mxu0 %v846
        %867 = vmatprep.subr.mxu0 0.0
        %868 = vmatpush1.msra.mxu0 %v847
        %869 = vmatprep.subr.mxu0 0.0
        %870 = vmatpush1.msra.mxu0 %v848
        %871 = vmatprep.subr.mxu0 0.0
        %872 = vmatpush1.msra.mxu0 %v849
        %873 = vmatprep.subr.mxu0 0.0
        %874 = vmatpush1.msra.mxu0 %v850
        %875 = vmatprep.subr.mxu0 0.0
        %876 = vmatpush1.msra.mxu0 %v851
        %877 = vmatprep.subr.mxu0 0.0
        %878 = vmatpush1.msra.mxu0 %v852
        %879 = vmatprep.subr.mxu0 0.0
        %880 = vmatpush1.msra.mxu0 %v853
        %881 = vmatprep.subr.mxu0 0.0
        %882 = vmatpush1.msra.mxu0 %v854
        %883 = vmatprep.subr.mxu0 0.0
        %884 = vmatpush1.msra.mxu0 %v855
        %885 = vmatprep.subr.mxu0 0.0
        %886 = vmatpush1.msra.mxu0 %v856
        %887 = vmatprep.subr.mxu0 0.0
        %888 = vmatpush1.msra.mxu0 %v857
        %889 = vmatprep.subr.mxu0 0.0
        %890 = vmatpush1.msra.mxu0 %v858
        %891 = vmatprep.subr.mxu0 0.0
        %892 = vmatpush1.msra.mxu0 0.0
        %893 = vmatprep.subr.mxu0 0.0
        %894 = vmatpush1.msra.mxu0 0.0
        %895 = vmatprep.subr.mxu0 0.0
        %896 = vmatpush1.msra.mxu0 0.0
        %897 = vmatprep.subr.mxu0 0.0
        %898 = vmatpush1.msra.mxu0 0.0
        %899 = vmatprep.subr.mxu0 0.0
        %900 = vmatpush1.msra.mxu0 0.0
        %901 = vmatprep.subr.mxu0 0.0
        %902 = vmatpush1.msra.mxu0 0.0
        %903 = vmatprep.subr.mxu0 0.0
        %904 = vmatpush1.msra.mxu0 0.0
        %905 = vmatprep.subr.mxu0 0.0
        %906 = vmatpush1.msra.mxu0 0.0
        %907 = vmatprep.subr.mxu0 0.0
        %908 = vmatpush1.msra.mxu0 0.0
        %909 = vmatprep.subr.mxu0 0.0
        %910 = vmatpush1.msra.mxu0 0.0
        %911 = vmatprep.subr.mxu0 0.0
        %912 = vmatpush1.msra.mxu0 0.0
        %913 = vmatprep.subr.mxu0 0.0
        %914 = vmatpush1.msra.mxu0 0.0
        %915 = vmatprep.subr.mxu0 0.0
        %916 = vmatpush1.msra.mxu0 0.0
        %917 = vmatprep.subr.mxu0 0.0
        %918 = vmatpush1.msra.mxu0 0.0
        %919 = vmatprep.subr.mxu0 0.0
        %920 = vmatpush1.msra.mxu0 0.0
        %921 = vmatprep.subr.mxu0 0.0
        %922 = vmatpush1.msra.mxu0 0.0
        %923 = vmatprep.mubr.f32.mxu0 0.0
        %924 = vmatmul.mubr.f32.gmra.mrb[0].mxu0 %v811
        %v925 = vpop.f32.mrb[0].mxu0
        %v926 = vadd.f32 0.0, %v925
        %v927 = vpop.f32.mrb[0].mxu0
        %928 = vmatprep.mubr.f32.mxu0 0.0
        %929 = vmatmul.mubr.f32.gmra.mrb[0].mxu0 %v812
        %v930 = vpop.f32.mrb[0].mxu0
        %v931 = vadd.f32 0.0, %v930
        %v932 = vpop.f32.mrb[0].mxu0
        %933 = vmatprep.mubr.f32.mxu0 0.0
        %934 = vmatmul.mubr.f32.gmra.mrb[0].mxu0 %v813
        %v935 = vpop.f32.mrb[0].mxu0
        %v936 = vadd.f32 0.0, %v935
        %v937 = vpop.f32.mrb[0].mxu0
        %938 = vmatprep.mubr.f32.mxu0 0.0
        %939 = vmatmul.mubr.f32.gmra.mrb[0].mxu0 %v814
        %v940 = vpop.f32.mrb[0].mxu0
        %v941 = vadd.f32 0.0, %v940
        %v942 = vpop.f32.mrb[0].mxu0
        %943 = vmatprep.mubr.f32.mxu0 0.0
        %944 = vmatmul.mubr.f32.gmra.mrb[0].mxu0 %v815
        %v945 = vpop.f32.mrb[0].mxu0
        %v946 = vadd.f32 0.0, %v945
        %v947 = vpop.f32.mrb[0].mxu0
        %948 = vmatprep.mubr.f32.mxu0 0.0
        %949 = vmatmul.mubr.f32.gmra.mrb[0].mxu0 %v816
        %v950 = vpop.f32.mrb[0].mxu0
        %v951 = vadd.f32 0.0, %v950
        %v952 = vpop.f32.mrb[0].mxu0
        %953 = vmatprep.mubr.f32.mxu0 0.0
        %954 = vmatmul.mubr.f32.gmra.mrb[0].mxu0 %v817
        %v955 = vpop.f32.mrb[0].mxu0
        %v956 = vadd.f32 0.0, %v955
        %v957 = vpop.f32.mrb[0].mxu0
        %958 = vmatprep.mubr.f32.mxu0 0.0
        %959 = vmatmul.mubr.f32.gmra.mrb[0].mxu0 %v818
        %v960 = vpop.f32.mrb[0].mxu0
        %v961 = vadd.f32 0.0, %v960
        %v962 = vpop.f32.mrb[0].mxu0
        %963 = vmatprep.mubr.f32.mxu0 0.0
        %964 = vmatmul.mubr.f32.gmra.mrb[0].mxu0 %v819
        %v965 = vpop.f32.mrb[0].mxu0
        %v966 = vadd.f32 0.0, %v965
        %v967 = vpop.f32.mrb[0].mxu0
        %968 = vmatprep.mubr.f32.mxu0 0.0
        %969 = vmatmul.mubr.f32.gmra.mrb[0].mxu0 %v820
        %v970 = vpop.f32.mrb[0].mxu0
        %v971 = vadd.f32 0.0, %v970
        %v972 = vpop.f32.mrb[0].mxu0
        %973 = vmatprep.mubr.f32.mxu0 0.0
        %974 = vmatmul.mubr.f32.gmra.mrb[0].mxu0 %v821
        %v975 = vpop.f32.mrb[0].mxu0
        %v976 = vadd.f32 0.0, %v975
        %v977 = vpop.f32.mrb[0].mxu0
        %978 = vmatprep.mubr.f32.mxu0 0.0
        %979 = vmatmul.mubr.f32.gmra.mrb[0].mxu0 %v822
        %v980 = vpop.f32.mrb[0].mxu0
        %v981 = vadd.f32 0.0, %v980
        %v982 = vpop.f32.mrb[0].mxu0
        %983 = vmatprep.mubr.f32.mxu0 0.0
        %984 = vmatmul.mubr.f32.gmra.mrb[0].mxu0 %v823
        %v985 = vpop.f32.mrb[0].mxu0
        %v986 = vadd.f32 0.0, %v985
        %v987 = vpop.f32.mrb[0].mxu0
        %988 = vmatprep.mubr.f32.mxu0 0.0
        %989 = vmatmul.mubr.f32.gmra.mrb[0].mxu0 %v824
        %v990 = vpop.f32.mrb[0].mxu0
        %v991 = vadd.f32 0.0, %v990
        %v992 = vpop.f32.mrb[0].mxu0
        %993 = vmatprep.mubr.f32.mxu0 0.0
        %994 = vmatmul.mubr.f32.gmra.mrb[0].mxu0 %v825
        %v995 = vpop.f32.mrb[0].mxu0
        %v996 = vadd.f32 0.0, %v995
        %v997 = vpop.f32.mrb[0].mxu0
        %998 = vmatprep.mubr.f32.mxu0 0.0
        %999 = vmatmul.mubr.f32.gmra.mrb[0].mxu0 %v826
        %v1000 = vpop.f32.mrb[0].mxu0
        %v1001 = vadd.f32 0.0, %v1000
        %v1002 = vpop.f32.mrb[0].mxu0
        %1003 = vmatprep.mubr.f32.mxu0 0.0
        %1004 = vmatmul.mubr.f32.gmra.mrb[0].mxu0 %v827
        %v1005 = vpop.f32.mrb[0].mxu0
        %v1006 = vadd.f32 0.0, %v1005
        %v1007 = vpop.f32.mrb[0].mxu0
        %1008 = vmatprep.mubr.f32.mxu0 0.0
        %1009 = vmatmul.mubr.f32.gmra.mrb[0].mxu0 %v828
        %v1010 = vpop.f32.mrb[0].mxu0
        %v1011 = vadd.f32 0.0, %v1010
        %v1012 = vpop.f32.mrb[0].mxu0
        %1013 = vmatprep.mubr.f32.mxu0 0.0
        %1014 = vmatmul.mubr.f32.gmra.mrb[0].mxu0 %v829
        %v1015 = vpop.f32.mrb[0].mxu0
        %v1016 = vadd.f32 0.0, %v1015
        %v1017 = vpop.f32.mrb[0].mxu0
        %1018 = vmatprep.mubr.f32.mxu0 0.0
        %1019 = vmatmul.mubr.f32.gmra.mrb[0].mxu0 %v830
        %v1020 = vpop.f32.mrb[0].mxu0
        %v1021 = vadd.f32 0.0, %v1020
        %v1022 = vpop.f32.mrb[0].mxu0
        %1023 = vmatprep.mubr.f32.mxu0 0.0
        %1024 = vmatmul.mubr.f32.gmra.mrb[0].mxu0 %v831
        %v1025 = vpop.f32.mrb[0].mxu0
        %v1026 = vadd.f32 0.0, %v1025
        %v1027 = vpop.f32.mrb[0].mxu0
        %1028 = vmatprep.mubr.f32.mxu0 0.0
        %1029 = vmatmul.mubr.f32.gmra.mrb[0].mxu0 %v832
        %v1030 = vpop.f32.mrb[0].mxu0
        %v1031 = vadd.f32 0.0, %v1030
        %v1032 = vpop.f32.mrb[0].mxu0
        %1033 = vmatprep.mubr.f32.mxu0 0.0
        %1034 = vmatmul.mubr.f32.gmra.mrb[0].mxu0 %v833
        %v1035 = vpop.f32.mrb[0].mxu0
        %v1036 = vadd.f32 0.0, %v1035
        %v1037 = vpop.f32.mrb[0].mxu0
        %1038 = vmatprep.mubr.f32.mxu0 0.0
        %1039 = vmatmul.mubr.f32.gmra.mrb[0].mxu0 %v834
        %v1040 = vpop.f32.mrb[0].mxu0
        %v1041 = vadd.f32 0.0, %v1040
        %v1042 = vpop.f32.mrb[0].mxu0
        %1043 = vmatprep.mubr.f32.mxu0 0.0
        %1044 = vmatmul.mubr.f32.gmra.mrb[0].mxu0 %v835
        %v1045 = vpop.f32.mrb[0].mxu0
        %v1046 = vadd.f32 0.0, %v1045
        %v1047 = vpop.f32.mrb[0].mxu0
        %1048 = vmatprep.mubr.f32.mxu0 0.0
        %1049 = vmatmul.mubr.f32.gmra.mrb[0].mxu0 %v836
        %v1050 = vpop.f32.mrb[0].mxu0
        %v1051 = vadd.f32 0.0, %v1050
        %v1052 = vpop.f32.mrb[0].mxu0
        %1053 = vmatprep.mubr.f32.mxu0 0.0
        %1054 = vmatmul.mubr.f32.gmra.mrb[0].mxu0 %v837
        %v1055 = vpop.f32.mrb[0].mxu0
        %v1056 = vadd.f32 0.0, %v1055
        %v1057 = vpop.f32.mrb[0].mxu0
        %1058 = vmatprep.mubr.f32.mxu0 0.0
        %1059 = vmatmul.mubr.f32.gmra.mrb[0].mxu0 %v838
        %v1060 = vpop.f32.mrb[0].mxu0
        %v1061 = vadd.f32 0.0, %v1060
        %v1062 = vpop.f32.mrb[0].mxu0
        %1063 = vmatprep.mubr.f32.mxu0 0.0
        %1064 = vmatmul.mubr.f32.gmra.mrb[0].mxu0 %v839
        %v1065 = vpop.f32.mrb[0].mxu0
        %v1066 = vadd.f32 0.0, %v1065
        %v1067 = vpop.f32.mrb[0].mxu0
        %1068 = vmatprep.mubr.f32.mxu0 0.0
        %1069 = vmatmul.mubr.f32.gmra.mrb[0].mxu0 %v840
        %v1070 = vpop.f32.mrb[0].mxu0
        %v1071 = vadd.f32 0.0, %v1070
        %v1072 = vpop.f32.mrb[0].mxu0
        %1073 = vmatprep.mubr.f32.mxu0 0.0
        %1074 = vmatmul.mubr.f32.gmra.mrb[0].mxu0 %v841
        %v1075 = vpop.f32.mrb[0].mxu0
        %v1076 = vadd.f32 0.0, %v1075
        %v1077 = vpop.f32.mrb[0].mxu0
        %1078 = vmatprep.mubr.f32.mxu0 0.0
        %1079 = vmatmul.mubr.f32.gmra.mrb[0].mxu0 %v842
        %v1080 = vpop.f32.mrb[0].mxu0
        %v1081 = vadd.f32 0.0, %v1080
        %v1082 = vpop.f32.mrb[0].mxu0
        %1083 = vdwg.mxu0
        %1084 = vxpose.xlu0.b32.start [1/16] %v926, 128
        %1085 = vxpose.xlu0.b32.cont [2/16] %v931, 128
        %1086 = vxpose.xlu0.b32.cont [3/16] %v936, 128
        %1087 = vxpose.xlu0.b32.cont [4/16] %v941, 128
        %1088 = vxpose.xlu0.b32.cont [5/16] %v946, 128
        %1089 = vxpose.xlu0.b32.cont [6/16] %v951, 128
        %1090 = vxpose.xlu0.b32.cont [7/16] %v956, 128
        %1091 = vxpose.xlu0.b32.cont [8/16] %v961, 128
        %1092 = vxpose.xlu0.b32.cont [9/16] %v966, 128
        %1093 = vxpose.xlu0.b32.cont [10/16] %v971, 128
        %1094 = vxpose.xlu0.b32.cont [11/16] %v976, 128
        %1095 = vxpose.xlu0.b32.cont [12/16] %v981, 128
        %1096 = vxpose.xlu0.b32.cont [13/16] %v986, 128
        %1097 = vxpose.xlu0.b32.cont [14/16] %v991, 128
        %1098 = vxpose.xlu0.b32.cont [15/16] %v996, 128
        %1099 = vxpose.xlu0.b32.end [16/16] %v1001, 128
        %v1100 = vpop.trf.xlu0
        %v1101 = vpop.trf.xlu0
        %v1102 = vpop.trf.xlu0
        %v1103 = vpop.trf.xlu0
        %v1104 = vpop.trf.xlu0
        %v1105 = vpop.trf.xlu0
        %v1106 = vpop.trf.xlu0
        %v1107 = vpop.trf.xlu0
        %v1108 = vpop.trf.xlu0
        %v1109 = vpop.trf.xlu0
        %v1110 = vpop.trf.xlu0
        %v1111 = vpop.trf.xlu0
        %v1112 = vpop.trf.xlu0
        %v1113 = vpop.trf.xlu0
        %v1114 = vpop.trf.xlu0
        %v1115 = vpop.trf.xlu0
        %1116 = vxpose.xlu0.b32.start [1/16] %v1006, 128
        %1117 = vxpose.xlu0.b32.cont [2/16] %v1011, 128
        %1118 = vxpose.xlu0.b32.cont [3/16] %v1016, 128
        %1119 = vxpose.xlu0.b32.cont [4/16] %v1021, 128
        %1120 = vxpose.xlu0.b32.cont [5/16] %v1026, 128
        %1121 = vxpose.xlu0.b32.cont [6/16] %v1031, 128
        %1122 = vxpose.xlu0.b32.cont [7/16] %v1036, 128
        %1123 = vxpose.xlu0.b32.cont [8/16] %v1041, 128
        %1124 = vxpose.xlu0.b32.cont [9/16] %v1046, 128
        %1125 = vxpose.xlu0.b32.cont [10/16] %v1051, 128
        %1126 = vxpose.xlu0.b32.cont [11/16] %v1056, 128
        %1127 = vxpose.xlu0.b32.cont [12/16] %v1061, 128
        %1128 = vxpose.xlu0.b32.cont [13/16] %v1066, 128
        %1129 = vxpose.xlu0.b32.cont [14/16] %v1071, 128
        %1130 = vxpose.xlu0.b32.cont [15/16] %v1076, 128
        %1131 = vxpose.xlu0.b32.end [16/16] %v1081, 128
        %v1132 = vpop.trf.xlu0
        %v1133 = vpop.trf.xlu0
        %v1134 = vpop.trf.xlu0
        %v1135 = vpop.trf.xlu0
        %v1136 = vpop.trf.xlu0
        %v1137 = vpop.trf.xlu0
        %v1138 = vpop.trf.xlu0
        %v1139 = vpop.trf.xlu0
        %v1140 = vpop.trf.xlu0
        %v1141 = vpop.trf.xlu0
        %v1142 = vpop.trf.xlu0
        %v1143 = vpop.trf.xlu0
        %v1144 = vpop.trf.xlu0
        %v1145 = vpop.trf.xlu0
        %v1146 = vpop.trf.xlu0
        %v1147 = vpop.trf.xlu0
        %s1148 = smul.u32 %s31, 2
        %s1149 = smul.addr %s1148, 8
        %s1150 = scalar_lea.vmem [#allocation2], %s1149
        %1151 = vst [vmem:[%s1150] sm:$0xff] %v1100
        %1152 = vst [vmem:[%s1150 + $0x8] sm:$0xff] %v1132
        %v1153 = vld [vmem:[#allocation3] sm:$0x1]
        %vm1154 = vcmask 1040384
        %v1155 = vsel %vm1154, %v1100, -inf
        %v1156 = vsel %vm1154, %v1132, -inf
        %v1157 = vmax.f32 %v1155, %v1156
        %1158 = vmax.xlane.f32.xlu0 %v1157
        %v1159 = vpop.xlane.xlu0 %1158
        %v1160 = vmax.f32 %v1153, %v1159
        %v1161 = vsub.f32 %v1153, %v1160
        %v1162 = vmul.f32 %v1161, 1.442695
        %v1163 = vpow.pop %v1162
        %1165 = vset.pattern.permute.xlu0 0
        %1166 = vperm.xlu0 %1165, %v1160
        %v1167 = vpop.permute.xlu0 %1166
        %v1169 = vlaneseq
        %v1170 = vshrl.u32 %v1169, 7
        %v1171 = vsub.s32 0, %v1170
        %v1172 = vrot.slane %v1167, %v1171
        %v1173 = vsub.f32 %v1100, %v1172
        %v1174 = vsub.f32 %v1132, %v1172
        %v1175 = vmul.f32 %v1173, 1.442695
        %v1176 = vpow.pop %v1175
        %v1177 = vmul.f32 %v1174, 1.442695
        %v1178 = vpow.pop %v1177
        %v1179 = vld [vmem:[#allocation4] sm:$0x1]
        %v1180 = vmul.f32 %v1163, %v1179
        %v1181 = vsel %vm1154, %v1176, 0.0
        %v1182 = vsel %vm1154, %v1178, 0.0
        %v1183 = vadd.f32 %v1181, %v1182
        %1184 = vadd.xlane.f32.xlu0 %v1183
        %v1185 = vpop.xlane.xlu0 %1184
        %v1186 = vadd.f32 %v1180, %v1185
        %vm1187 = vcmask 0
        %1188 = vst.msk [vmem:[#allocation4] sm:$0x1] %vm1187, %v1186
        %v1189 = vld [vmem:[#allocation5] sm:$0x1]
        %1191 = vset.pattern.permute.xlu0 0
        %1192 = vperm.xlu0 %1191, %v1163
        %v1193 = vpop.permute.xlu0 %1192
        %v1195 = vlaneseq
        %v1196 = vshrl.u32 %v1195, 7
        %v1197 = vsub.s32 0, %v1196
        %v1198 = vrot.slane %v1193, %v1197
        %v1199 = vmul.f32 %v1198, %v1189
        %1200 = vmatprep.subr.mxu0 0.0
        %1201 = vmatpush1.msra.mxu0 %v266
        %1202 = vmatprep.subr.mxu0 0.0
        %1203 = vmatpush1.msra.mxu0 %v267
        %1204 = vmatprep.subr.mxu0 0.0
        %1205 = vmatpush1.msra.mxu0 %v268
        %1206 = vmatprep.subr.mxu0 0.0
        %1207 = vmatpush1.msra.mxu0 %v269
        %1208 = vmatprep.subr.mxu0 0.0
        %1209 = vmatpush1.msra.mxu0 %v270
        %1210 = vmatprep.subr.mxu0 0.0
        %1211 = vmatpush1.msra.mxu0 %v271
        %1212 = vmatprep.subr.mxu0 0.0
        %1213 = vmatpush1.msra.mxu0 %v272
        %1214 = vmatprep.subr.mxu0 0.0
        %1215 = vmatpush1.msra.mxu0 %v273
        %1216 = vmatprep.subr.mxu0 0.0
        %1217 = vmatpush1.msra.mxu0 %v274
        %1218 = vmatprep.subr.mxu0 0.0
        %1219 = vmatpush1.msra.mxu0 %v275
        %1220 = vmatprep.subr.mxu0 0.0
        %1221 = vmatpush1.msra.mxu0 %v276
        %1222 = vmatprep.subr.mxu0 0.0
        %1223 = vmatpush1.msra.mxu0 %v277
        %1224 = vmatprep.subr.mxu0 0.0
        %1225 = vmatpush1.msra.mxu0 %v278
        %1226 = vmatprep.subr.mxu0 0.0
        %1227 = vmatpush1.msra.mxu0 %v279
        %1228 = vmatprep.subr.mxu0 0.0
        %1229 = vmatpush1.msra.mxu0 %v280
        %1230 = vmatprep.subr.mxu0 0.0
        %1231 = vmatpush1.msra.mxu0 %v281
        %1232 = vmatprep.subr.mxu0 0.0
        %1233 = vmatpush1.msra.mxu0 %v282
        %1234 = vmatprep.subr.mxu0 0.0
        %1235 = vmatpush1.msra.mxu0 %v283
        %1236 = vmatprep.subr.mxu0 0.0
        %1237 = vmatpush1.msra.mxu0 %v284
        %1238 = vmatprep.subr.mxu0 0.0
        %1239 = vmatpush1.msra.mxu0 %v285
        %1240 = vmatprep.subr.mxu0 0.0
        %1241 = vmatpush1.msra.mxu0 %v286
        %1242 = vmatprep.subr.mxu0 0.0
        %1243 = vmatpush1.msra.mxu0 %v287
        %1244 = vmatprep.subr.mxu0 0.0
        %1245 = vmatpush1.msra.mxu0 %v288
        %1246 = vmatprep.subr.mxu0 0.0
        %1247 = vmatpush1.msra.mxu0 %v289
        %1248 = vmatprep.subr.mxu0 0.0
        %1249 = vmatpush1.msra.mxu0 %v290
        %1250 = vmatprep.subr.mxu0 0.0
        %1251 = vmatpush1.msra.mxu0 %v291
        %1252 = vmatprep.subr.mxu0 0.0
        %1253 = vmatpush1.msra.mxu0 %v292
        %1254 = vmatprep.subr.mxu0 0.0
        %1255 = vmatpush1.msra.mxu0 %v293
        %1256 = vmatprep.subr.mxu0 0.0
        %1257 = vmatpush1.msra.mxu0 %v294
        %1258 = vmatprep.subr.mxu0 0.0
        %1259 = vmatpush1.msra.mxu0 %v295
        %1260 = vmatprep.subr.mxu0 0.0
        %1261 = vmatpush1.msra.mxu0 %v296
        %1262 = vmatprep.subr.mxu0 0.0
        %1263 = vmatpush1.msra.mxu0 %v297
        %1264 = vmatprep.mubr.f32.mxu0 %v1178
        %1265 = vmatmul.mubr.f32.gmra.mrb[0].mxu0 %v1176
        %v1266 = vpop.f32.mrb[0].mxu0
        %v1267 = vadd.f32 0.0, %v1266
        %v1268 = vpop.f32.mrb[0].mxu0
        %1269 = vdwg.mxu0
        %v1270 = vadd.f32 %v1199, %v1267
        %1271 = vst [vmem:[#allocation5] sm:$0x1] %v1270
        %1272 = vst.msk [vmem:[#allocation3] sm:$0x1] %vm1187, %v1160
        // Predicated region
        $region45: #{tpu_custom_call.1} parent=31 // pred_check
          %p1273 = pneg %p258
        $region46: #{tpu_custom_call.1} parent=31 // pred_check_branch
          %1275 = sbr.rel (%p1273) target = $region48
        $region47: #{tpu_custom_call.1} parent=31 // pred_region
          %v1276 = vld [vmem:[#allocation5] sm:$0x1]
          %v1277 = vld [vmem:[#allocation4] sm:$0x1]
          %1279 = vset.pattern.permute.xlu0 0
          %1280 = vperm.xlu0 %1279, %v1277
          %v1281 = vpop.permute.xlu0 %1280
          %v1283 = vlaneseq
          %v1284 = vshrl.u32 %v1283, 7
          %v1285 = vsub.s32 0, %v1284
          %v1286 = vrot.slane %v1281, %v1285
          %v1287 = vrcp.pop %v1286
          %v1288 = vmul.f32 %v1276, %v1287
          %1289 = vst [vmem:[%s249] sm:$0x1] %v1288
          %v1290 = vld [vmem:[#allocation2] sm:$0xff]
          %v1291 = vld [vmem:[#allocation2 + $0x8] sm:$0xff]
          %vm1292 = vcmask 1043456
          %v1293 = vsel %vm1292, %v1290, -inf
          %v1294 = vsel %vm1292, %v1291, -inf
          %v1295 = vmax.f32 %v1293, %v1294
          %1296 = vmax.xlane.f32.xlu0 %v1295
          %v1297 = vpop.xlane.xlu0 %1296
          %v1298 = vsub.f32 %v1290, %v1297
          %v1299 = vsub.f32 %v1291, %v1297
          %v1300 = vmul.f32 %v1298, 1.442695
          %v1301 = vpow.pop %v1300
          %v1302 = vmul.f32 %v1299, 1.442695
          %v1303 = vpow.pop %v1302
          %v1304 = vsel %vm1292, %v1301, 0.0
          %v1305 = vsel %vm1292, %v1303, 0.0
          %v1306 = vadd.f32 %v1304, %v1305
          %1307 = vadd.xlane.f32.xlu0 %v1306
          %v1308 = vpop.xlane.xlu0 %1307
          %v1309 = vadd.f32 %v1308, 0.0
          %v1310 = vrcp.pop %v1309
          %v1311 = vmul.f32 %v1301, %v1310
          %v1312 = vmul.f32 %v1303, %v1310
          %v1313 = vsel %vm1292, %v1311, 0.0
          %v1314 = vrot.slane %v1313, 4
          %v1315 = vadd.f32 %v1313, %v1314
          %v1316 = vrot.slane %v1315, 2
          %v1317 = vadd.f32 %v1315, %v1316
          %v1318 = vrot.slane %v1317, 1
          %v1319 = vadd.f32 %v1317, %v1318
          %v1320 = vsel %vm1292, %v1312, 0.0
          %v1321 = vrot.slane %v1320, 4
          %v1322 = vadd.f32 %v1320, %v1321
          %v1323 = vrot.slane %v1322, 2
          %v1324 = vadd.f32 %v1322, %v1323
          %v1325 = vrot.slane %v1324, 1
          %v1326 = vadd.f32 %v1324, %v1325
          %v1327 = vrcp.pop 4.0
          %v1328 = vmul.f32 %v1319, %v1327
          %v1329 = vmul.f32 %v1326, %v1327
          %v1332 = vcombine.low %v1328, %v1329
          %v1334 = vunpack.c.l.s4 1966171168
          %v1335 = vunpack.c.0.s8 %v1334
          %v1336 = vlaneseq
          %v1337 = vshrl.u32 %v1336, 7
          %v1338 = vsub.s32 %v1335, %v1337
          %v1339 = vrot.slane %v1332, %v1338
          %v1341 = vunpack.c.l.s4 1966171168
          %v1342 = vunpack.c.0.s8 %v1341
          %v1343 = vlaneseq
          %v1344 = vshrl.u32 %v1343, 7
          %v1345 = vsub.s32 %v1342, %v1344
          %v1346 = vrot.slane %v1339, %v1345
          %v1348 = vlaneseq
          %vm1349 = vcmp.ge.s32.totalorder %v1348, 0
          %vm1350 = vcmp.lt.s32.totalorder %v1348, 256
          %vm1351 = vmand %vm1349, %vm1350
          %1352 = vst.msk [vmem:[%s256] sm:$0x3] %vm1351, %v1346
        $region48: #{tpu_custom_call.1} parent=31 // pred_fallthru
          _
        %s1353 = sand.u32 %s116, 1
        %s1354 = scalar_lea.sflag [#allocation8], %s1353
        %s1355 = sand.u32 %s116, 1
        %s1356 = scalar_lea.vmem [#allocation11], %s1355
        %s1357 = sand.u32 %s142, 1
        %s1358 = scalar_lea.sflag [#allocation13], %s1357
        %s1359 = sand.u32 %s142, 1
        %s1360 = smul.addr %s1359, 2
        %s1361 = scalar_lea.vmem [#allocation12], %s1360
        // Predicated region
        $region49: #{tpu_custom_call.1} parent=31 // pred_check
          %p1362 = pneg %p126
        $region50: #{tpu_custom_call.1} parent=31 // pred_check_branch
          %1364 = sbr.rel (%p1362) target = $region52
        $region51: #{tpu_custom_call.1} parent=31 // pred_region
          %s1366 = ssub.s32 16, 16
          %1367 = vsyncadd %s1354, %s1366
          %s1368 = smul.addr %s30, 16
          %s1369 = scalar_lea.hbm %s3, %s1368
          %s1371 = sshll.u32 %s1356, 4
          %s1372 = int_to_ptr.vmem [resolvable:$true] %s1371
          %1374 = dma.vmem_to_hbm [thread:$0]  %s1372, 16, %s1369, %s1354
        $region52: #{tpu_custom_call.1} parent=31 // pred_fallthru
          _
        // Predicated region
        $region53: #{tpu_custom_call.1} parent=31 // pred_check
          %p1375 = pneg %p152
        $region54: #{tpu_custom_call.1} parent=31 // pred_check_branch
          %1377 = sbr.rel (%p1375) target = $region56
        $region55: #{tpu_custom_call.1} parent=31 // pred_region
          %s1379 = ssub.s32 32, 32
          %1380 = vsyncadd %s1358, %s1379
          %s1381 = smul.addr %s30, 2
          %s1382 = smul.addr %s1381, 16
          %s1383 = scalar_lea.hbm %s4, %s1382
          %s1385 = sshll.u32 %s1361, 4
          %s1386 = int_to_ptr.vmem [resolvable:$true] %s1385
          %1388 = dma.vmem_to_hbm [thread:$0]  %s1386, 32, %s1383, %s1358
        $region56: #{tpu_custom_call.1} parent=31 // pred_fallthru
          _
      $region32: #{tpu_custom_call.1} parent=5 // pred_fallthru
        _
      %p1389 = scmp.le.s32.totalorder 2, %s21
      // Predicated region
      $region57: #{tpu_custom_call.1} parent=5 // pred_check
        %p1390 = pneg %p1389
      $region58: #{tpu_custom_call.1} parent=5 // pred_check_branch
        %1392 = sbr.rel (%p1390) target = $region60
      $region59: #{tpu_custom_call.1} parent=5 // pred_region
        %s1393 = ssub.s32 %s21, 2
        // Predicated region
        $region61: #{tpu_custom_call.1} parent=59 // pred_check
          %p1394 = pneg %p132
        $region62: #{tpu_custom_call.1} parent=59 // pred_check_branch
          %1396 = sbr.rel (%p1394) target = $region64
        $region63: #{tpu_custom_call.1} parent=59 // pred_region
          %s1397 = sand.u32 %s117, 1
          %s1398 = scalar_lea.sflag [#allocation8], %s1397
          %s1399 = sand.u32 %s117, 1
          %s1400 = scalar_lea.vmem [#allocation11], %s1399
          %1401 = dma.done %s1398, 16
        $region64: #{tpu_custom_call.1} parent=59 // pred_fallthru
          _
        // Predicated region
        $region65: #{tpu_custom_call.1} parent=59 // pred_check
          %p1402 = pneg %p158
        $region66: #{tpu_custom_call.1} parent=59 // pred_check_branch
          %1404 = sbr.rel (%p1402) target = $region68
        $region67: #{tpu_custom_call.1} parent=59 // pred_region
          %s1405 = sand.u32 %s143, 1
          %s1406 = scalar_lea.sflag [#allocation13], %s1405
          %s1407 = sand.u32 %s143, 1
          %s1408 = smul.addr %s1407, 2
          %s1409 = scalar_lea.vmem [#allocation12], %s1408
          %1410 = dma.done %s1406, 32
        $region68: #{tpu_custom_call.1} parent=59 // pred_fallthru
          _
      $region60: #{tpu_custom_call.1} parent=5 // pred_fallthru
        _
    $region6: #{tpu_custom_call.1} parent=1 // loop_footer
      %s25 = sadd.s32 1, %s21
    $region7: #{tpu_custom_call.1} parent=1 // loop_footer_branch
      %20 = sbr.rel target = $region3
    $region8: #{tpu_custom_call.1} parent=1 // loop_exit
      _
    %1411 = vsyncpa [#allocation7], 1
    %s1412 = scalar_lea.sflag [#allocation7], 1
    %1413 = vsyncpa %s1412, 1
    %1414 = vsyncpa [#allocation10], 1
    %1415 = vsyncpa [#allocation8], 1
    %s1416 = scalar_lea.sflag [#allocation8], 1
    %1417 = vsyncpa %s1416, 1
    %1418 = vsyncpa [#allocation13], 1
    %s1419 = scalar_lea.sflag [#allocation13], 1
    %1420 = vsyncpa %s1419, 1

</llo_original>
